<compile_context>
chip_gen: v7x
topology: tpu7x:2x2x1
jax: 0.10.0
libtpu: 0.0.40
codegen_flags: <defaults>
</compile_context>

<pallas_src>
import functools

import numpy as np

import jax
import jax.numpy as jnp
from jax.experimental import pallas as pl
from jax.experimental.pallas import tpu as pltpu


# ----------------------------------------------------------------------------
# Static 0/1 selection matrices reproducing the module's .view() scrambles, plus
# the fused block-diagonal + causal attention bias.  Built once with numpy at
# trace time (depends only on B, S, H, D).
# ----------------------------------------------------------------------------
def _build_view_constants(B, S, H, D):
    E = H * D
    BS, HS, BHS, C3E = B * S, H * S, B * H * S, 3 * E

    # --- first view: (B, S, 3E) -> (B, 3, H, S, D); output rows ordered (i3, b, h, s) ---
    rho = np.arange(3 * BHS)
    i3 = rho // BHS
    b = (rho % BHS) // HS
    h = (rho % HS) // S
    s = rho % S
    f0 = i3 * HS * D + h * S * D + s * D            # per-batch flat offset of this D-block
    src_row = b * S + f0 // C3E                     # row of the (B*S, 3E) qkv matrix
    src_blk = (f0 % C3E) // D                       # which D-wide block inside that row
    row_sel = (np.arange(BS)[None, :] == src_row[:, None]).astype(np.float32)        # (3BHS, BS)
    blk_mask = ((np.arange(C3E)[None, :] // D) == src_blk[:, None]).astype(np.float32)  # (3BHS, 3E)
    col_map = (np.arange(C3E)[:, None] % D == np.arange(D)[None, :]).astype(np.float32)  # (3E, D)

    # --- fused block-diagonal (same (b,h)) + causal additive bias for (BHS, BHS) scores ---
    r = np.arange(BHS)
    valid = ((r[:, None] // S) == (r[None, :] // S)) & ((r[None, :] % S) <= (r[:, None] % S))
    attn_bias = np.where(valid, 0.0, -np.inf).astype(np.float32)                      # (BHS, BHS)

    # --- second view: (B, H, S, D) -> (B, S, E):
    #     output row (j*BS + b*S + s) gathers attention-output row (b*HS + s*H + j) ---
    rho2 = np.arange(H * BS)
    j = rho2 // BS
    b2 = (rho2 % BS) // S
    s2 = rho2 % S
    src = b2 * HS + s2 * H + j
    sel_cat = (np.arange(BHS)[None, :] == src[:, None]).astype(np.float32)            # (H*BS, BHS)

    return row_sel, blk_mask, col_map, attn_bias, sel_cat


# ----------------------------------------------------------------------------
# Single fused kernel: QKV proj -> (scrambled view) -> causal MHA -> (scrambled
# view) + concat proj -> residual + LayerNorm -> FFN.
# ----------------------------------------------------------------------------
def _fused_kernel(x_ref, wqkv_ref, bqkv_ref, wp_ref, bp_ref, gamma_ref, beta_ref,
                  w1_ref, b1_ref, w2_ref, b2_ref,
                  rowsel_ref, blkmask_ref, colmap_ref, bias_ref, selcat_ref,
                  o_ref, *, B, S, H, D, scale, add_norm, eps, fast):
    f32 = jnp.float32
    mm = jnp.bfloat16 if fast else f32
    E = H * D
    BS, BHS = B * S, B * H * S

    x = x_ref[...].astype(f32)                                         # (BS, E), f32 for residual

    # (1) fused QKV projection, all batches at once (MXU, f32 accumulate).
    qkv = jnp.dot(x.astype(mm), wqkv_ref[...],
                  preferred_element_type=f32) + bqkv_ref[...]          # (BS, 3E)

    # (2) torch's qkv.view(B,3,H,S,D) realized as exact 0/1 selection matmuls.
    t = jnp.dot(rowsel_ref[...], qkv.astype(mm), preferred_element_type=f32)   # (3BHS, 3E)
    t = t * blkmask_ref[...]
    qkv_rows = jnp.dot(t.astype(mm), colmap_ref[...], preferred_element_type=f32)  # (3BHS, D)
    q = qkv_rows[0 * BHS:1 * BHS, :].astype(mm)                        # rows ordered (b, h, s)
    k = qkv_rows[1 * BHS:2 * BHS, :].astype(mm)
    v = qkv_rows[2 * BHS:3 * BHS, :].astype(mm)

    # (3) all (batch, head) attention blocks in one matmul; off-block / future entries
    #     are disabled by the precomputed -inf bias.  Softmax math stays in f32.
    s_mat = jax.lax.dot_general(q, k, (((1,), (1,)), ((), ())),
                                preferred_element_type=f32)            # (BHS, BHS)
    s_mat = s_mat * (1.0 / scale) + bias_ref[...]
    m = jnp.max(s_mat, axis=-1, keepdims=True)
    p = jnp.exp(s_mat - m)
    denom = jnp.sum(p, axis=-1, keepdims=True)
    if fast:
        p = p * pl.reciprocal(denom, approx=True)                      # EUP slot, nearly free
    else:
        p = p / denom
    g = jnp.dot(p.astype(mm), v, preferred_element_type=f32)           # (BHS, D) == Hs rows (b,h,s)

    # (4) torch's Hs.view(B,S,E) + concat_proj: gather rows with sel_cat, then accumulate
    #     the H per-head D-row blocks of Wp (static slices, no reshape needed).
    r_all = jnp.dot(selcat_ref[...], g.astype(mm), preferred_element_type=f32)  # (H*BS, D)
    wp = wp_ref[...]
    acc = jnp.zeros((BS, E), f32)
    for j in range(H):
        a_j = r_all[j * BS:(j + 1) * BS, :].astype(mm)
        acc = acc + jnp.dot(a_j, wp[j * D:(j + 1) * D, :], preferred_element_type=f32)
    h_out = acc + bp_ref[...]
    # attn_dropout: identity (inference)

    # (5) residual + LayerNorm (f32 VPU/EUP math).
    if add_norm:
        h_out = h_out + x
        mu = jnp.mean(h_out, axis=-1, keepdims=True)
        var = jnp.mean((h_out - mu) ** 2, axis=-1, keepdims=True)
        h_out = (h_out - mu) * jax.lax.rsqrt(var + eps)
        h_out = h_out * gamma_ref[...] + beta_ref[...]

    # (6) FFN (ff dropouts: identity).
    h1 = jnp.dot(h_out.astype(mm), w1_ref[...], preferred_element_type=f32) + b1_ref[...]
    h1 = jnp.maximum(h1, 0.0)
    out = jnp.dot(h1.astype(mm), w2_ref[...], preferred_element_type=f32) + b2_ref[...]
    o_ref[...] = out.astype(o_ref.dtype)


# ----------------------------------------------------------------------------
# Wrapper: one pallas_call for the whole forward.
# ----------------------------------------------------------------------------
def multi_head_transformer(x, params, *, num_heads, add_norm=True, fast=True, eps=1e-5):
    B, S, E = x.shape
    H = num_heads
    D = E // H
    BS, BHS = B * S, B * H * S
    F = params["w1"].shape[1]
    scale = float(E) ** 0.5      # module scales by sqrt(embed_dim), not sqrt(head_dim)

    row_sel, blk_mask, col_map, attn_bias, sel_cat = _build_view_constants(B, S, H, D)

    mm = jnp.bfloat16 if fast else jnp.float32
    # Pre-cast matmul operands outside the kernel (review item: halves DMA / VMEM for the
    # fast path; biases / LN params stay f32 since they feed f32 arithmetic).
    wqkv = params["wqkv"].astype(mm)
    wp = params["wp"].astype(mm)
    w1 = params["w1"].astype(mm)
    w2 = params["w2"].astype(mm)
    row_sel_c = jnp.asarray(row_sel, mm)
    col_map_c = jnp.asarray(col_map, mm)
    sel_cat_c = jnp.asarray(sel_cat, mm)
    blk_mask_c = jnp.asarray(blk_mask, jnp.float32)
    attn_bias_c = jnp.asarray(attn_bias, jnp.float32)

    x2 = x.reshape(BS, E)        # fold batch into matrix rows (contiguous => free under jit)

    def full_spec(shape):
        return pl.BlockSpec(shape, lambda i, _nd=len(shape): (0,) * _nd)

    out2 = pl.pallas_call(
        functools.partial(_fused_kernel, B=B, S=S, H=H, D=D, scale=scale,
                          add_norm=add_norm, eps=eps, fast=fast),
        out_shape=jax.ShapeDtypeStruct((BS, E), x.dtype),
        grid=(1,),
        in_specs=[
            full_spec((BS, E)),            # x
            full_spec((E, 3 * E)),         # Wqkv
            full_spec((1, 3 * E)),         # bqkv
            full_spec((E, E)),             # Wp
            full_spec((1, E)),             # bp
            full_spec((1, E)),             # gamma
            full_spec((1, E)),             # beta
            full_spec((E, F)),             # W1
            full_spec((1, F)),             # b1
            full_spec((F, E)),             # W2
            full_spec((1, E)),             # b2
            full_spec((3 * BHS, BS)),      # row_sel     (view #1)
            full_spec((3 * BHS, 3 * E)),   # blk_mask    (view #1)
            full_spec((3 * E, D)),         # col_map     (view #1)
            full_spec((BHS, BHS)),         # attn_bias   (block-diag + causal)
            full_spec((H * BS, BHS)),      # sel_cat     (view #2)
        ],
        out_specs=full_spec((BS, E)),
        compiler_params=pltpu.CompilerParams(dimension_semantics=("arbitrary",)),
    )(x2, wqkv, params["bqkv"].reshape(1, 3 * E), wp, params["bp"].reshape(1, E),
      params["gamma"].reshape(1, E), params["beta"].reshape(1, E),
      w1, params["b1"].reshape(1, F), w2, params["b2"].reshape(1, E),
      row_sel_c, blk_mask_c, col_map_c, attn_bias_c, sel_cat_c)

    return out2.reshape(B, S, E)


# ----------------------------------------------------------------------------
# Pure-JAX reference (mirrors the PyTorch forward exactly), for verification.
# ----------------------------------------------------------------------------
def reference(x, params, *, num_heads, add_norm=True):
    HI = jax.lax.Precision.HIGHEST
    B, S, E = x.shape
    D = E // num_heads
    qkv = jnp.matmul(x, params["wqkv"], precision=HI) + params["bqkv"]
    qkv = qkv.reshape(B, 3, num_heads, S, D)
    q, k, v = qkv[:, 0], qkv[:, 1], qkv[:, 2]
    a = jnp.einsum("bhqd,bhkd->bhqk", q, k, precision=HI) / (float(E) ** 0.5)
    mask = jnp.triu(jnp.full((S, S), -jnp.inf, dtype=a.dtype), k=1)
    a = jax.nn.softmax(a + mask, axis=-1)
    hs = jnp.einsum("bhqk,bhkd->bhqd", a, v, precision=HI)
    h = hs.reshape(B, S, E)
    h = jnp.matmul(h, params["wp"], precision=HI) + params["bp"]
    if add_norm:
        h = h + x
        mean = h.mean(-1, keepdims=True)
        var = ((h - mean) ** 2).mean(-1, keepdims=True)
        h = (h - mean) / jnp.sqrt(var + 1e-5) * params["gamma"] + params["beta"]
    h1 = jax.nn.relu(jnp.matmul(h, params["w1"], precision=HI) + params["b1"])
    return jnp.matmul(h1, params["w2"], precision=HI) + params["b2"]


def init_params(key, embed_dim, ff_dim):
    ks = jax.random.split(key, 8)
    s = 0.05
    return {
        "wqkv": jax.random.normal(ks[0], (embed_dim, 3 * embed_dim), jnp.float32) * s,
        "bqkv": jax.random.normal(ks[1], (3 * embed_dim,), jnp.float32) * s,
        "wp":   jax.random.normal(ks[2], (embed_dim, embed_dim), jnp.float32) * s,
        "bp":   jax.random.normal(ks[3], (embed_dim,), jnp.float32) * s,
        "gamma": jnp.ones((embed_dim,), jnp.float32),   # nn.LayerNorm default init
        "beta":  jnp.zeros((embed_dim,), jnp.float32),
        "w1":   jax.random.normal(ks[4], (embed_dim, ff_dim), jnp.float32) * s,
        "b1":   jax.random.normal(ks[5], (ff_dim,), jnp.float32) * s,
        "w2":   jax.random.normal(ks[6], (ff_dim, embed_dim), jnp.float32) * s,
        "b2":   jax.random.normal(ks[7], (embed_dim,), jnp.float32) * s,
    }


if __name__ == "__main__":
    # small shapes consistent with the module: batch=2, seq=8, embed=32, heads=4, ff=64
    B, S, E, H, FF = 2, 8, 32, 4, 64

    key = jax.random.PRNGKey(0)
    kx, kp = jax.random.split(key)
    x = jax.random.normal(kx, (B, S, E), jnp.float32)
    params = init_params(kp, E, FF)

    fwd_fast = jax.jit(functools.partial(
        multi_head_transformer, num_heads=H, add_norm=True, fast=True))
    fwd_exact = jax.jit(functools.partial(
        multi_head_transformer, num_heads=H, add_norm=True, fast=False))

    out_fast = jax.block_until_ready(fwd_fast(x, params))    # bf16-MXU / f32-softmax path
    out_exact = jax.block_until_ready(fwd_exact(x, params))  # pure-f32 path

    ref = reference(x, params, num_heads=H, add_norm=True)
    assert out_fast.shape == (B, S, E) and out_exact.shape == (B, S, E)
    assert jnp.allclose(out_exact, ref, atol=2e-3, rtol=2e-3), "exact path mismatch vs reference"
    assert jnp.allclose(out_fast, ref, atol=3e-2, rtol=3e-2), "bf16 fast path mismatch vs reference"

    print("KERNEL_OK")
</pallas_src>

<mosaic_0001>
module attributes {stable_mosaic.version = 11 : i64} {
  func.func @_fused_kernel(%arg0: i32, %arg1: memref<16x32xf32, #tpu.memory_space<vmem>>, %arg2: memref<32x96xbf16, #tpu.memory_space<vmem>>, %arg3: memref<1x96xf32, #tpu.memory_space<vmem>>, %arg4: memref<32x32xbf16, #tpu.memory_space<vmem>>, %arg5: memref<1x32xf32, #tpu.memory_space<vmem>>, %arg6: memref<1x32xf32, #tpu.memory_space<vmem>>, %arg7: memref<1x32xf32, #tpu.memory_space<vmem>>, %arg8: memref<32x64xbf16, #tpu.memory_space<vmem>>, %arg9: memref<1x64xf32, #tpu.memory_space<vmem>>, %arg10: memref<64x32xbf16, #tpu.memory_space<vmem>>, %arg11: memref<1x32xf32, #tpu.memory_space<vmem>>, %arg12: memref<192x16xbf16, #tpu.memory_space<vmem>>, %arg13: memref<192x96xf32, #tpu.memory_space<vmem>>, %arg14: memref<96x8xbf16, #tpu.memory_space<vmem>>, %arg15: memref<64x64xf32, #tpu.memory_space<vmem>>, %arg16: memref<64x64xbf16, #tpu.memory_space<vmem>>, %arg17: memref<16x32xf32, #tpu.memory_space<vmem>>) attributes {dimension_semantics = [#tpu.dimension_semantics<arbitrary>], iteration_bounds = array<i64: 1>, scalar_prefetch = 0 : i64, scratch_operands = 0 : i64, tpu.core_type = #tpu.core_type<tc>, window_params = [{pipeline_mode = #tpu.pipeline_mode<synchronous>, transform_indices = @transform_0, window_bounds = array<i64: 16, 32>}, {pipeline_mode = #tpu.pipeline_mode<synchronous>, transform_indices = @transform_1, window_bounds = array<i64: 32, 96>}, {pipeline_mode = #tpu.pipeline_mode<synchronous>, transform_indices = @transform_2, window_bounds = array<i64: 1, 96>}, {pipeline_mode = #tpu.pipeline_mode<synchronous>, transform_indices = @transform_3, window_bounds = array<i64: 32, 32>}, {pipeline_mode = #tpu.pipeline_mode<synchronous>, transform_indices = @transform_4, window_bounds = array<i64: 1, 32>}, {pipeline_mode = #tpu.pipeline_mode<synchronous>, transform_indices = @transform_5, window_bounds = array<i64: 1, 32>}, {pipeline_mode = #tpu.pipeline_mode<synchronous>, transform_indices = @transform_6, window_bounds = array<i64: 1, 32>}, {pipeline_mode = #tpu.pipeline_mode<synchronous>, transform_indices = @transform_7, window_bounds = array<i64: 32, 64>}, {pipeline_mode = #tpu.pipeline_mode<synchronous>, transform_indices = @transform_8, window_bounds = array<i64: 1, 64>}, {pipeline_mode = #tpu.pipeline_mode<synchronous>, transform_indices = @transform_9, window_bounds = array<i64: 64, 32>}, {pipeline_mode = #tpu.pipeline_mode<synchronous>, transform_indices = @transform_10, window_bounds = array<i64: 1, 32>}, {pipeline_mode = #tpu.pipeline_mode<synchronous>, transform_indices = @transform_11, window_bounds = array<i64: 192, 16>}, {pipeline_mode = #tpu.pipeline_mode<synchronous>, transform_indices = @transform_12, window_bounds = array<i64: 192, 96>}, {pipeline_mode = #tpu.pipeline_mode<synchronous>, transform_indices = @transform_13, window_bounds = array<i64: 96, 8>}, {pipeline_mode = #tpu.pipeline_mode<synchronous>, transform_indices = @transform_14, window_bounds = array<i64: 64, 64>}, {pipeline_mode = #tpu.pipeline_mode<synchronous>, transform_indices = @transform_15, window_bounds = array<i64: 64, 64>}, {pipeline_mode = #tpu.pipeline_mode<synchronous>, transform_indices = @transform_16, window_bounds = array<i64: 16, 32>}]} {
    %c0 = arith.constant 0 : index
    %c0_0 = arith.constant 0 : index
    %0 = vector.load %arg1[%c0, %c0_0] : memref<16x32xf32, #tpu.memory_space<vmem>>, vector<16x32xf32>
    %1 = arith.truncf %0 : vector<16x32xf32> to vector<16x32xbf16>
    %c0_1 = arith.constant 0 : index
    %c0_2 = arith.constant 0 : index
    %2 = vector.load %arg2[%c0_1, %c0_2] : memref<32x96xbf16, #tpu.memory_space<vmem>>, vector<32x96xbf16>
    %cst = arith.constant dense<0.000000e+00> : vector<16x96xf32>
    %3 = tpu.matmul %1, %2, %cst {dimension_numbers = #tpu.dot_dimension_numbers<[1], [0], [0], [1], [0, 0, 1, 1], [], []>} : vector<16x32xbf16>, vector<32x96xbf16>, vector<16x96xf32> -> vector<16x96xf32>
    %c0_3 = arith.constant 0 : index
    %c0_4 = arith.constant 0 : index
    %4 = vector.load %arg3[%c0_3, %c0_4] : memref<1x96xf32, #tpu.memory_space<vmem>>, vector<1x96xf32>
    %5 = vector.broadcast %4 : vector<1x96xf32> to vector<16x96xf32>
    %6 = arith.addf %3, %5 : vector<16x96xf32>
    %c0_5 = arith.constant 0 : index
    %c0_6 = arith.constant 0 : index
    %7 = vector.load %arg12[%c0_5, %c0_6] : memref<192x16xbf16, #tpu.memory_space<vmem>>, vector<192x16xbf16>
    %8 = arith.truncf %6 : vector<16x96xf32> to vector<16x96xbf16>
    %cst_7 = arith.constant dense<0.000000e+00> : vector<192x96xf32>
    %9 = tpu.matmul %7, %8, %cst_7 {dimension_numbers = #tpu.dot_dimension_numbers<[1], [0], [0], [1], [0, 0, 1, 1], [], []>} : vector<192x16xbf16>, vector<16x96xbf16>, vector<192x96xf32> -> vector<192x96xf32>
    %c0_8 = arith.constant 0 : index
    %c0_9 = arith.constant 0 : index
    %10 = vector.load %arg13[%c0_8, %c0_9] : memref<192x96xf32, #tpu.memory_space<vmem>>, vector<192x96xf32>
    %11 = arith.mulf %9, %10 : vector<192x96xf32>
    %12 = arith.truncf %11 : vector<192x96xf32> to vector<192x96xbf16>
    %c0_10 = arith.constant 0 : index
    %c0_11 = arith.constant 0 : index
    %13 = vector.load %arg14[%c0_10, %c0_11] : memref<96x8xbf16, #tpu.memory_space<vmem>>, vector<96x8xbf16>
    %cst_12 = arith.constant dense<0.000000e+00> : vector<192x8xf32>
    %14 = tpu.matmul %12, %13, %cst_12 {dimension_numbers = #tpu.dot_dimension_numbers<[1], [0], [0], [1], [0, 0, 1, 1], [], []>} : vector<192x96xbf16>, vector<96x8xbf16>, vector<192x8xf32> -> vector<192x8xf32>
    %15 = vector.extract_strided_slice %14 {offsets = [0, 0], sizes = [64, 8], strides = [1, 1]} : vector<192x8xf32> to vector<64x8xf32>
    %16 = arith.truncf %15 : vector<64x8xf32> to vector<64x8xbf16>
    %17 = vector.extract_strided_slice %14 {offsets = [64, 0], sizes = [64, 8], strides = [1, 1]} : vector<192x8xf32> to vector<64x8xf32>
    %18 = arith.truncf %17 : vector<64x8xf32> to vector<64x8xbf16>
    %19 = vector.extract_strided_slice %14 {offsets = [128, 0], sizes = [64, 8], strides = [1, 1]} : vector<192x8xf32> to vector<64x8xf32>
    %20 = arith.truncf %19 : vector<64x8xf32> to vector<64x8xbf16>
    %cst_13 = arith.constant dense<0.000000e+00> : vector<64x64xf32>
    %21 = tpu.matmul %16, %18, %cst_13 {dimension_numbers = #tpu.dot_dimension_numbers<[1], [1], [0], [0], [0, 0, 1, 0], [], []>} : vector<64x8xbf16>, vector<64x8xbf16>, vector<64x64xf32> -> vector<64x64xf32>
    %cst_14 = arith.constant 0.176776692 : f32
    %22 = vector.broadcast %cst_14 : f32 to vector<64x64xf32>
    %23 = arith.mulf %21, %22 : vector<64x64xf32>
    %c0_15 = arith.constant 0 : index
    %c0_16 = arith.constant 0 : index
    %24 = vector.load %arg15[%c0_15, %c0_16] : memref<64x64xf32, #tpu.memory_space<vmem>>, vector<64x64xf32>
    %25 = arith.addf %23, %24 : vector<64x64xf32>
    %cst_17 = arith.constant dense<0xFF800000> : vector<64xf32>
    %26 = vector.multi_reduction <maximumf>, %25, %cst_17 [1] : vector<64x64xf32> to vector<64xf32>
    %27 = vector.shape_cast %26 : vector<64xf32> to vector<64x1xf32>
    %28 = vector.broadcast %27 : vector<64x1xf32> to vector<64x64xf32>
    %29 = arith.subf %25, %28 : vector<64x64xf32>
    %30 = math.exp %29 : vector<64x64xf32>
    %cst_18 = arith.constant dense<0.000000e+00> : vector<64xf32>
    %31 = vector.multi_reduction <add>, %30, %cst_18 [1] : vector<64x64xf32> to vector<64xf32>
    %32 = vector.shape_cast %31 : vector<64xf32> to vector<64x1xf32>
    %33 = tpu.reciprocal %32 {approx = true} : vector<64x1xf32> -> vector<64x1xf32>
    %34 = vector.broadcast %33 : vector<64x1xf32> to vector<64x64xf32>
    %35 = arith.mulf %30, %34 : vector<64x64xf32>
    %36 = arith.truncf %35 : vector<64x64xf32> to vector<64x64xbf16>
    %cst_19 = arith.constant dense<0.000000e+00> : vector<64x8xf32>
    %37 = tpu.matmul %36, %20, %cst_19 {dimension_numbers = #tpu.dot_dimension_numbers<[1], [0], [0], [1], [0, 0, 1, 1], [], []>} : vector<64x64xbf16>, vector<64x8xbf16>, vector<64x8xf32> -> vector<64x8xf32>
    %c0_20 = arith.constant 0 : index
    %c0_21 = arith.constant 0 : index
    %38 = vector.load %arg16[%c0_20, %c0_21] : memref<64x64xbf16, #tpu.memory_space<vmem>>, vector<64x64xbf16>
    %39 = arith.truncf %37 : vector<64x8xf32> to vector<64x8xbf16>
    %cst_22 = arith.constant dense<0.000000e+00> : vector<64x8xf32>
    %40 = tpu.matmul %38, %39, %cst_22 {dimension_numbers = #tpu.dot_dimension_numbers<[1], [0], [0], [1], [0, 0, 1, 1], [], []>} : vector<64x64xbf16>, vector<64x8xbf16>, vector<64x8xf32> -> vector<64x8xf32>
    %c0_23 = arith.constant 0 : index
    %c0_24 = arith.constant 0 : index
    %41 = vector.load %arg4[%c0_23, %c0_24] : memref<32x32xbf16, #tpu.memory_space<vmem>>, vector<32x32xbf16>
    %cst_25 = arith.constant 0.000000e+00 : f32
    %42 = vector.broadcast %cst_25 : f32 to vector<16x32xf32>
    %43 = vector.extract_strided_slice %40 {offsets = [0, 0], sizes = [16, 8], strides = [1, 1]} : vector<64x8xf32> to vector<16x8xf32>
    %44 = arith.truncf %43 : vector<16x8xf32> to vector<16x8xbf16>
    %45 = vector.extract_strided_slice %41 {offsets = [0, 0], sizes = [8, 32], strides = [1, 1]} : vector<32x32xbf16> to vector<8x32xbf16>
    %cst_26 = arith.constant dense<0.000000e+00> : vector<16x32xf32>
    %46 = tpu.matmul %44, %45, %cst_26 {dimension_numbers = #tpu.dot_dimension_numbers<[1], [0], [0], [1], [0, 0, 1, 1], [], []>} : vector<16x8xbf16>, vector<8x32xbf16>, vector<16x32xf32> -> vector<16x32xf32>
    %47 = arith.addf %42, %46 : vector<16x32xf32>
    %48 = vector.extract_strided_slice %40 {offsets = [16, 0], sizes = [16, 8], strides = [1, 1]} : vector<64x8xf32> to vector<16x8xf32>
    %49 = arith.truncf %48 : vector<16x8xf32> to vector<16x8xbf16>
    %50 = vector.extract_strided_slice %41 {offsets = [8, 0], sizes = [8, 32], strides = [1, 1]} : vector<32x32xbf16> to vector<8x32xbf16>
    %cst_27 = arith.constant dense<0.000000e+00> : vector<16x32xf32>
    %51 = tpu.matmul %49, %50, %cst_27 {dimension_numbers = #tpu.dot_dimension_numbers<[1], [0], [0], [1], [0, 0, 1, 1], [], []>} : vector<16x8xbf16>, vector<8x32xbf16>, vector<16x32xf32> -> vector<16x32xf32>
    %52 = arith.addf %47, %51 : vector<16x32xf32>
    %53 = vector.extract_strided_slice %40 {offsets = [32, 0], sizes = [16, 8], strides = [1, 1]} : vector<64x8xf32> to vector<16x8xf32>
    %54 = arith.truncf %53 : vector<16x8xf32> to vector<16x8xbf16>
    %55 = vector.extract_strided_slice %41 {offsets = [16, 0], sizes = [8, 32], strides = [1, 1]} : vector<32x32xbf16> to vector<8x32xbf16>
    %cst_28 = arith.constant dense<0.000000e+00> : vector<16x32xf32>
    %56 = tpu.matmul %54, %55, %cst_28 {dimension_numbers = #tpu.dot_dimension_numbers<[1], [0], [0], [1], [0, 0, 1, 1], [], []>} : vector<16x8xbf16>, vector<8x32xbf16>, vector<16x32xf32> -> vector<16x32xf32>
    %57 = arith.addf %52, %56 : vector<16x32xf32>
    %58 = vector.extract_strided_slice %40 {offsets = [48, 0], sizes = [16, 8], strides = [1, 1]} : vector<64x8xf32> to vector<16x8xf32>
    %59 = arith.truncf %58 : vector<16x8xf32> to vector<16x8xbf16>
    %60 = vector.extract_strided_slice %41 {offsets = [24, 0], sizes = [8, 32], strides = [1, 1]} : vector<32x32xbf16> to vector<8x32xbf16>
    %cst_29 = arith.constant dense<0.000000e+00> : vector<16x32xf32>
    %61 = tpu.matmul %59, %60, %cst_29 {dimension_numbers = #tpu.dot_dimension_numbers<[1], [0], [0], [1], [0, 0, 1, 1], [], []>} : vector<16x8xbf16>, vector<8x32xbf16>, vector<16x32xf32> -> vector<16x32xf32>
    %62 = arith.addf %57, %61 : vector<16x32xf32>
    %c0_30 = arith.constant 0 : index
    %c0_31 = arith.constant 0 : index
    %63 = vector.load %arg5[%c0_30, %c0_31] : memref<1x32xf32, #tpu.memory_space<vmem>>, vector<1x32xf32>
    %64 = vector.broadcast %63 : vector<1x32xf32> to vector<16x32xf32>
    %65 = arith.addf %62, %64 : vector<16x32xf32>
    %66 = arith.addf %65, %0 : vector<16x32xf32>
    %cst_32 = arith.constant dense<0.000000e+00> : vector<16xf32>
    %67 = vector.multi_reduction <add>, %66, %cst_32 [1] : vector<16x32xf32> to vector<16xf32>
    %68 = vector.shape_cast %67 : vector<16xf32> to vector<16x1xf32>
    %cst_33 = arith.constant 3.200000e+01 : f32
    %69 = vector.broadcast %cst_33 : f32 to vector<16x1xf32>
    %70 = arith.divf %68, %69 : vector<16x1xf32>
    %71 = vector.broadcast %70 : vector<16x1xf32> to vector<16x32xf32>
    %72 = arith.subf %66, %71 : vector<16x32xf32>
    %73 = arith.mulf %72, %72 : vector<16x32xf32>
    %cst_34 = arith.constant dense<0.000000e+00> : vector<16xf32>
    %74 = vector.multi_reduction <add>, %73, %cst_34 [1] : vector<16x32xf32> to vector<16xf32>
    %75 = vector.shape_cast %74 : vector<16xf32> to vector<16x1xf32>
    %cst_35 = arith.constant 3.200000e+01 : f32
    %76 = vector.broadcast %cst_35 : f32 to vector<16x1xf32>
    %77 = arith.divf %75, %76 : vector<16x1xf32>
    %78 = vector.broadcast %70 : vector<16x1xf32> to vector<16x32xf32>
    %79 = arith.subf %66, %78 : vector<16x32xf32>
    %cst_36 = arith.constant 9.99999974E-6 : f32
    %80 = vector.broadcast %cst_36 : f32 to vector<16x1xf32>
    %81 = arith.addf %77, %80 : vector<16x1xf32>
    %82 = math.rsqrt %81 : vector<16x1xf32>
    %83 = vector.broadcast %82 : vector<16x1xf32> to vector<16x32xf32>
    %84 = arith.mulf %79, %83 : vector<16x32xf32>
    %c0_37 = arith.constant 0 : index
    %c0_38 = arith.constant 0 : index
    %85 = vector.load %arg6[%c0_37, %c0_38] : memref<1x32xf32, #tpu.memory_space<vmem>>, vector<1x32xf32>
    %86 = vector.broadcast %85 : vector<1x32xf32> to vector<16x32xf32>
    %87 = arith.mulf %84, %86 : vector<16x32xf32>
    %c0_39 = arith.constant 0 : index
    %c0_40 = arith.constant 0 : index
    %88 = vector.load %arg7[%c0_39, %c0_40] : memref<1x32xf32, #tpu.memory_space<vmem>>, vector<1x32xf32>
    %89 = vector.broadcast %88 : vector<1x32xf32> to vector<16x32xf32>
    %90 = arith.addf %87, %89 : vector<16x32xf32>
    %91 = arith.truncf %90 : vector<16x32xf32> to vector<16x32xbf16>
    %c0_41 = arith.constant 0 : index
    %c0_42 = arith.constant 0 : index
    %92 = vector.load %arg8[%c0_41, %c0_42] : memref<32x64xbf16, #tpu.memory_space<vmem>>, vector<32x64xbf16>
    %cst_43 = arith.constant dense<0.000000e+00> : vector<16x64xf32>
    %93 = tpu.matmul %91, %92, %cst_43 {dimension_numbers = #tpu.dot_dimension_numbers<[1], [0], [0], [1], [0, 0, 1, 1], [], []>} : vector<16x32xbf16>, vector<32x64xbf16>, vector<16x64xf32> -> vector<16x64xf32>
    %c0_44 = arith.constant 0 : index
    %c0_45 = arith.constant 0 : index
    %94 = vector.load %arg9[%c0_44, %c0_45] : memref<1x64xf32, #tpu.memory_space<vmem>>, vector<1x64xf32>
    %95 = vector.broadcast %94 : vector<1x64xf32> to vector<16x64xf32>
    %96 = arith.addf %93, %95 : vector<16x64xf32>
    %cst_46 = arith.constant 0.000000e+00 : f32
    %97 = vector.broadcast %cst_46 : f32 to vector<16x64xf32>
    %98 = arith.maximumf %96, %97 : vector<16x64xf32>
    %99 = arith.truncf %98 : vector<16x64xf32> to vector<16x64xbf16>
    %c0_47 = arith.constant 0 : index
    %c0_48 = arith.constant 0 : index
    %100 = vector.load %arg10[%c0_47, %c0_48] : memref<64x32xbf16, #tpu.memory_space<vmem>>, vector<64x32xbf16>
    %cst_49 = arith.constant dense<0.000000e+00> : vector<16x32xf32>
    %101 = tpu.matmul %99, %100, %cst_49 {dimension_numbers = #tpu.dot_dimension_numbers<[1], [0], [0], [1], [0, 0, 1, 1], [], []>} : vector<16x64xbf16>, vector<64x32xbf16>, vector<16x32xf32> -> vector<16x32xf32>
    %c0_50 = arith.constant 0 : index
    %c0_51 = arith.constant 0 : index
    %102 = vector.load %arg11[%c0_50, %c0_51] : memref<1x32xf32, #tpu.memory_space<vmem>>, vector<1x32xf32>
    %103 = vector.broadcast %102 : vector<1x32xf32> to vector<16x32xf32>
    %104 = arith.addf %101, %103 : vector<16x32xf32>
    %c0_52 = arith.constant 0 : index
    %c0_53 = arith.constant 0 : index
    %105 = vector.load %arg17[%c0_52, %c0_53] : memref<16x32xf32, #tpu.memory_space<vmem>>, vector<16x32xf32>
    tpu.vector_store %arg17[%c0_52, %c0_53], %104 {strides = array<i32>} : memref<16x32xf32, #tpu.memory_space<vmem>>, vector<16x32xf32>,
    return
  }
  func.func @transform_0(%arg0: i32) -> (i32, i32) {
    %c0_i32 = arith.constant 0 : i32
    %c0_i32_0 = arith.constant 0 : i32
    %c0_i32_1 = arith.constant 0 : i32
    return %c0_i32, %c0_i32_0 : i32, i32
  }
  func.func @transform_1(%arg0: i32) -> (i32, i32) {
    %c0_i32 = arith.constant 0 : i32
    %c0_i32_0 = arith.constant 0 : i32
    %c0_i32_1 = arith.constant 0 : i32
    return %c0_i32, %c0_i32_0 : i32, i32
  }
  func.func @transform_2(%arg0: i32) -> (i32, i32) {
    %c0_i32 = arith.constant 0 : i32
    %c0_i32_0 = arith.constant 0 : i32
    %c0_i32_1 = arith.constant 0 : i32
    return %c0_i32, %c0_i32_0 : i32, i32
  }
  func.func @transform_3(%arg0: i32) -> (i32, i32) {
    %c0_i32 = arith.constant 0 : i32
    %c0_i32_0 = arith.constant 0 : i32
    %c0_i32_1 = arith.constant 0 : i32
    return %c0_i32, %c0_i32_0 : i32, i32
  }
  func.func @transform_4(%arg0: i32) -> (i32, i32) {
    %c0_i32 = arith.constant 0 : i32
    %c0_i32_0 = arith.constant 0 : i32
    %c0_i32_1 = arith.constant 0 : i32
    return %c0_i32, %c0_i32_0 : i32, i32
  }
  func.func @transform_5(%arg0: i32) -> (i32, i32) {
    %c0_i32 = arith.constant 0 : i32
    %c0_i32_0 = arith.constant 0 : i32
    %c0_i32_1 = arith.constant 0 : i32
    return %c0_i32, %c0_i32_0 : i32, i32
  }
  func.func @transform_6(%arg0: i32) -> (i32, i32) {
    %c0_i32 = arith.constant 0 : i32
    %c0_i32_0 = arith.constant 0 : i32
    %c0_i32_1 = arith.constant 0 : i32
    return %c0_i32, %c0_i32_0 : i32, i32
  }
  func.func @transform_7(%arg0: i32) -> (i32, i32) {
    %c0_i32 = arith.constant 0 : i32
    %c0_i32_0 = arith.constant 0 : i32
    %c0_i32_1 = arith.constant 0 : i32
    return %c0_i32, %c0_i32_0 : i32, i32
  }
  func.func @transform_8(%arg0: i32) -> (i32, i32) {
    %c0_i32 = arith.constant 0 : i32
    %c0_i32_0 = arith.constant 0 : i32
    %c0_i32_1 = arith.constant 0 : i32
    return %c0_i32, %c0_i32_0 : i32, i32
  }
  func.func @transform_9(%arg0: i32) -> (i32, i32) {
    %c0_i32 = arith.constant 0 : i32
    %c0_i32_0 = arith.constant 0 : i32
    %c0_i32_1 = arith.constant 0 : i32
    return %c0_i32, %c0_i32_0 : i32, i32
  }
  func.func @transform_10(%arg0: i32) -> (i32, i32) {
    %c0_i32 = arith.constant 0 : i32
    %c0_i32_0 = arith.constant 0 : i32
    %c0_i32_1 = arith.constant 0 : i32
    return %c0_i32, %c0_i32_0 : i32, i32
  }
  func.func @transform_11(%arg0: i32) -> (i32, i32) {
    %c0_i32 = arith.constant 0 : i32
    %c0_i32_0 = arith.constant 0 : i32
    %c0_i32_1 = arith.constant 0 : i32
    return %c0_i32, %c0_i32_0 : i32, i32
  }
  func.func @transform_12(%arg0: i32) -> (i32, i32) {
    %c0_i32 = arith.constant 0 : i32
    %c0_i32_0 = arith.constant 0 : i32
    %c0_i32_1 = arith.constant 0 : i32
    return %c0_i32, %c0_i32_0 : i32, i32
  }
  func.func @transform_13(%arg0: i32) -> (i32, i32) {
    %c0_i32 = arith.constant 0 : i32
    %c0_i32_0 = arith.constant 0 : i32
    %c0_i32_1 = arith.constant 0 : i32
    return %c0_i32, %c0_i32_0 : i32, i32
  }
  func.func @transform_14(%arg0: i32) -> (i32, i32) {
    %c0_i32 = arith.constant 0 : i32
    %c0_i32_0 = arith.constant 0 : i32
    %c0_i32_1 = arith.constant 0 : i32
    return %c0_i32, %c0_i32_0 : i32, i32
  }
  func.func @transform_15(%arg0: i32) -> (i32, i32) {
    %c0_i32 = arith.constant 0 : i32
    %c0_i32_0 = arith.constant 0 : i32
    %c0_i32_1 = arith.constant 0 : i32
    return %c0_i32, %c0_i32_0 : i32, i32
  }
  func.func @transform_16(%arg0: i32) -> (i32, i32) {
    %c0_i32 = arith.constant 0 : i32
    %c0_i32_0 = arith.constant 0 : i32
    %c0_i32_1 = arith.constant 0 : i32
    return %c0_i32, %c0_i32_0 : i32, i32
  }
}

</mosaic_0001>

<llo_original>
// kernel: multi_head_transformer.1
$region0: #{multi_head_transformer.1}
  #allocation0 [shape = 'u32[]', space=smem, size = 0x4, offset = 0x4, fixed_abs, tag = 'smem constant byte address 0x4 - core index']
  #allocation1 [shape = 'u32[144,128]{1,0:T(1,128)}', space=vmem, size = 0x12000, scoped, tag = 'internal scratch']
  %s0 = inlined_call_operand.hbm [shape: f32[16,32], index: 0, kind: input, shape index: {}]
  %s1 = inlined_call_operand.vmem [shape: bf16[32,96], index: 1, kind: input, shape index: {}]
  %s2 = inlined_call_operand.vmem [shape: f32[1,96], index: 2, kind: input, shape index: {}]
  %s3 = inlined_call_operand.vmem [shape: bf16[32,32], index: 3, kind: input, shape index: {}]
  %s4 = inlined_call_operand.vmem [shape: f32[1,32], index: 4, kind: input, shape index: {}]
  %s5 = inlined_call_operand.vmem [shape: f32[1,32], index: 5, kind: input, shape index: {}]
  %s6 = inlined_call_operand.hbm [shape: f32[1,32], index: 6, kind: input, shape index: {}]
  %s7 = inlined_call_operand.vmem [shape: bf16[32,64], index: 7, kind: input, shape index: {}]
  %s8 = inlined_call_operand.hbm [shape: f32[1,64], index: 8, kind: input, shape index: {}]
  %s9 = inlined_call_operand.vmem [shape: bf16[64,32], index: 9, kind: input, shape index: {}]
  %s10 = inlined_call_operand.hbm [shape: f32[1,32], index: 10, kind: input, shape index: {}]
  %s11 = inlined_call_operand.vmem [shape: bf16[192,16], index: 11, kind: input, shape index: {}]
  %s12 = inlined_call_operand.vmem [shape: f32[192,96], index: 12, kind: input, shape index: {}]
  %s13 = inlined_call_operand.hbm [shape: bf16[96,8], index: 13, kind: input, shape index: {}]
  %s14 = inlined_call_operand.hbm [shape: f32[64,64], index: 14, kind: input, shape index: {}]
  %s15 = inlined_call_operand.vmem [shape: bf16[64,64], index: 15, kind: input, shape index: {}]
  %s16 = inlined_call_operand.hbm [shape: f32[16,32], index: 16, kind: output, shape index: {}]
  %s17 = sld [smem:[#allocation0]]
  $region98: #{multi_head_transformer.1} parent=0
    _
  %s19 = ssub.s32 1, %s17
  %s20 = scalar_select 0, %s19, %s17
  $region1: #{multi_head_transformer.1} parent=0
    #allocation2 [shape = 'u8[8192]{0}', space=vmem, size = 0x2000, scoped, tag = 'input window, operand 0, single buffered']
    #allocation3 [shape = 's32[1]{0}', space=sflag, size = 0x4, scoped, tag = 'scoped memory for multi_head_transformer.1']
    #allocation4 [shape = 's32[1]{0}', space=sflag, size = 0x4, scoped, tag = 'scoped memory for multi_head_transformer.1']
    #allocation5 [shape = 'u8[512]{0}', space=vmem, size = 0x400, scoped, tag = 'input window, operand 6, single buffered']
    #allocation6 [shape = 's32[1]{0}', space=sflag, size = 0x4, scoped, tag = 'scoped memory for multi_head_transformer.1']
    #allocation7 [shape = 'u8[512]{0}', space=vmem, size = 0x400, scoped, tag = 'input window, operand 8, single buffered']
    #allocation8 [shape = 'u8[512]{0}', space=vmem, size = 0x400, scoped, tag = 'input window, operand 10, single buffered']
    #allocation9 [shape = 's32[1]{0}', space=sflag, size = 0x4, scoped, tag = 'scoped memory for multi_head_transformer.1']
    #allocation10 [shape = 'u8[24576]{0}', space=vmem, size = 0x6000, scoped, tag = 'input window, operand 13, single buffered']
    #allocation11 [shape = 'u8[32768]{0}', space=vmem, size = 0x8000, scoped, tag = 'input window, operand 14, single buffered']
    #allocation12 [shape = 's32[1]{0}', space=sflag, size = 0x4, scoped, tag = 'scoped memory for multi_head_transformer.1']
    #allocation13 [shape = 'u8[8192]{0}', space=vmem, size = 0x2000, scoped, tag = 'output window, operand 0, single buffered']
    %21 = vsyncpa [#allocation3], 0
    %22 = vsyncpa [#allocation6], 0
    %23 = vsyncpa [#allocation9], 0
    %24 = vsyncpa [#allocation12], 0
    %25 = vsyncpa [#allocation4], 0
    // Predicated region
    $region2: #{multi_head_transformer.1} parent=1 // pred_check
      _
    $region3: #{multi_head_transformer.1} parent=1 // pred_check_branch
      %27 = sbr.rel (0) target = $region5
    $region4: #{multi_head_transformer.1} parent=1 // pred_region
      %s29 = ssub.s32 256, 256
      %30 = vsyncadd [#allocation3], %s29
      %s31 = sshll.u32 [#allocation2], 4
      %s32 = int_to_ptr.vmem [resolvable:$true] %s31
      %37 = dma.hbm_to_vmem [thread:$0]  %s0, 256, %s32, [#allocation3], 128, 128, 8
    $region5: #{multi_head_transformer.1} parent=1 // pred_fallthru
      _
    // Predicated region
    $region6: #{multi_head_transformer.1} parent=1 // pred_check
      _
    $region7: #{multi_head_transformer.1} parent=1 // pred_check_branch
      %39 = sbr.rel (0) target = $region9
    $region8: #{multi_head_transformer.1} parent=1 // pred_region
      _
    $region9: #{multi_head_transformer.1} parent=1 // pred_fallthru
      _
    // Predicated region
    $region10: #{multi_head_transformer.1} parent=1 // pred_check
      _
    $region11: #{multi_head_transformer.1} parent=1 // pred_check_branch
      %41 = sbr.rel (0) target = $region13
    $region12: #{multi_head_transformer.1} parent=1 // pred_region
      _
    $region13: #{multi_head_transformer.1} parent=1 // pred_fallthru
      _
    // Predicated region
    $region14: #{multi_head_transformer.1} parent=1 // pred_check
      _
    $region15: #{multi_head_transformer.1} parent=1 // pred_check_branch
      %43 = sbr.rel (0) target = $region17
    $region16: #{multi_head_transformer.1} parent=1 // pred_region
      _
    $region17: #{multi_head_transformer.1} parent=1 // pred_fallthru
      _
    // Predicated region
    $region18: #{multi_head_transformer.1} parent=1 // pred_check
      _
    $region19: #{multi_head_transformer.1} parent=1 // pred_check_branch
      %45 = sbr.rel (0) target = $region21
    $region20: #{multi_head_transformer.1} parent=1 // pred_region
      _
    $region21: #{multi_head_transformer.1} parent=1 // pred_fallthru
      _
    // Predicated region
    $region22: #{multi_head_transformer.1} parent=1 // pred_check
      _
    $region23: #{multi_head_transformer.1} parent=1 // pred_check_branch
      %47 = sbr.rel (0) target = $region25
    $region24: #{multi_head_transformer.1} parent=1 // pred_region
      _
    $region25: #{multi_head_transformer.1} parent=1 // pred_fallthru
      _
    // Predicated region
    $region26: #{multi_head_transformer.1} parent=1 // pred_check
      _
    $region27: #{multi_head_transformer.1} parent=1 // pred_check_branch
      %49 = sbr.rel (0) target = $region29
    $region28: #{multi_head_transformer.1} parent=1 // pred_region
      %s51 = ssub.s32 16, 16
      %52 = vsyncadd [#allocation6], %s51
      %s54 = sshll.u32 [#allocation5], 4
      %s55 = int_to_ptr.vmem [resolvable:$true] %s54
      %57 = dma.hbm_to_vmem [thread:$0]  %s6, 16, %s55, [#allocation6]
    $region29: #{multi_head_transformer.1} parent=1 // pred_fallthru
      _
    // Predicated region
    $region30: #{multi_head_transformer.1} parent=1 // pred_check
      _
    $region31: #{multi_head_transformer.1} parent=1 // pred_check_branch
      %59 = sbr.rel (0) target = $region33
    $region32: #{multi_head_transformer.1} parent=1 // pred_region
      _
    $region33: #{multi_head_transformer.1} parent=1 // pred_fallthru
      _
    // Predicated region
    $region34: #{multi_head_transformer.1} parent=1 // pred_check
      _
    $region35: #{multi_head_transformer.1} parent=1 // pred_check_branch
      %61 = sbr.rel (0) target = $region37
    $region36: #{multi_head_transformer.1} parent=1 // pred_region
      %s63 = ssub.s32 16, 16
      %64 = vsyncadd [#allocation6], %s63
      %s66 = sshll.u32 [#allocation7], 4
      %s67 = int_to_ptr.vmem [resolvable:$true] %s66
      %69 = dma.hbm_to_vmem [thread:$0]  %s8, 16, %s67, [#allocation6]
    $region37: #{multi_head_transformer.1} parent=1 // pred_fallthru
      _
    // Predicated region
    $region38: #{multi_head_transformer.1} parent=1 // pred_check
      _
    $region39: #{multi_head_transformer.1} parent=1 // pred_check_branch
      %71 = sbr.rel (0) target = $region41
    $region40: #{multi_head_transformer.1} parent=1 // pred_region
      _
    $region41: #{multi_head_transformer.1} parent=1 // pred_fallthru
      _
    // Predicated region
    $region42: #{multi_head_transformer.1} parent=1 // pred_check
      _
    $region43: #{multi_head_transformer.1} parent=1 // pred_check_branch
      %73 = sbr.rel (0) target = $region45
    $region44: #{multi_head_transformer.1} parent=1 // pred_region
      %s75 = ssub.s32 16, 16
      %76 = vsyncadd [#allocation9], %s75
      %s78 = sshll.u32 [#allocation8], 4
      %s79 = int_to_ptr.vmem [resolvable:$true] %s78
      %81 = dma.hbm_to_vmem [thread:$0]  %s10, 16, %s79, [#allocation9]
    $region45: #{multi_head_transformer.1} parent=1 // pred_fallthru
      _
    // Predicated region
    $region46: #{multi_head_transformer.1} parent=1 // pred_check
      _
    $region47: #{multi_head_transformer.1} parent=1 // pred_check_branch
      %83 = sbr.rel (0) target = $region49
    $region48: #{multi_head_transformer.1} parent=1 // pred_region
      _
    $region49: #{multi_head_transformer.1} parent=1 // pred_fallthru
      _
    // Predicated region
    $region50: #{multi_head_transformer.1} parent=1 // pred_check
      _
    $region51: #{multi_head_transformer.1} parent=1 // pred_check_branch
      %85 = sbr.rel (0) target = $region53
    $region52: #{multi_head_transformer.1} parent=1 // pred_region
      _
    $region53: #{multi_head_transformer.1} parent=1 // pred_fallthru
      _
    // Predicated region
    $region54: #{multi_head_transformer.1} parent=1 // pred_check
      _
    $region55: #{multi_head_transformer.1} parent=1 // pred_check_branch
      %87 = sbr.rel (0) target = $region57
    $region56: #{multi_head_transformer.1} parent=1 // pred_region
      %s89 = ssub.s32 768, 768
      %90 = vsyncadd [#allocation9], %s89
      %s91 = sshll.u32 [#allocation10], 4
      %s92 = int_to_ptr.vmem [resolvable:$true] %s91
      %97 = dma.hbm_to_vmem [thread:$0]  %s13, 768, %s92, [#allocation9], 64, 64, 4
    $region57: #{multi_head_transformer.1} parent=1 // pred_fallthru
      _
    // Predicated region
    $region58: #{multi_head_transformer.1} parent=1 // pred_check
      _
    $region59: #{multi_head_transformer.1} parent=1 // pred_check_branch
      %99 = sbr.rel (0) target = $region61
    $region60: #{multi_head_transformer.1} parent=1 // pred_region
      %s101 = ssub.s32 1024, 1024
      %102 = vsyncadd [#allocation12], %s101
      %s103 = sshll.u32 [#allocation11], 4
      %s104 = int_to_ptr.vmem [resolvable:$true] %s103
      %109 = dma.hbm_to_vmem [thread:$0]  %s14, 1024, %s104, [#allocation12], 128, 128, 8
    $region61: #{multi_head_transformer.1} parent=1 // pred_fallthru
      _
    // Predicated region
    $region62: #{multi_head_transformer.1} parent=1 // pred_check
      _
    $region63: #{multi_head_transformer.1} parent=1 // pred_check_branch
      %111 = sbr.rel (0) target = $region65
    $region64: #{multi_head_transformer.1} parent=1 // pred_region
      _
    $region65: #{multi_head_transformer.1} parent=1 // pred_fallthru
      _
    // Predicated region
    $region66: #{multi_head_transformer.1} parent=1 // pred_check
      _
    $region67: #{multi_head_transformer.1} parent=1 // pred_check_branch
      %113 = sbr.rel (0) target = $region69
    $region68: #{multi_head_transformer.1} parent=1 // pred_region
      %114 = dma.done [#allocation3], 256
    $region69: #{multi_head_transformer.1} parent=1 // pred_fallthru
      _
    // Predicated region
    $region70: #{multi_head_transformer.1} parent=1 // pred_check
      _
    $region71: #{multi_head_transformer.1} parent=1 // pred_check_branch
      %116 = sbr.rel (0) target = $region73
    $region72: #{multi_head_transformer.1} parent=1 // pred_region
      %117 = dma.done [#allocation6], 16
    $region73: #{multi_head_transformer.1} parent=1 // pred_fallthru
      _
    // Predicated region
    $region74: #{multi_head_transformer.1} parent=1 // pred_check
      _
    $region75: #{multi_head_transformer.1} parent=1 // pred_check_branch
      %119 = sbr.rel (0) target = $region77
    $region76: #{multi_head_transformer.1} parent=1 // pred_region
      %120 = dma.done [#allocation6], 16
    $region77: #{multi_head_transformer.1} parent=1 // pred_fallthru
      _
    // Predicated region
    $region78: #{multi_head_transformer.1} parent=1 // pred_check
      _
    $region79: #{multi_head_transformer.1} parent=1 // pred_check_branch
      %122 = sbr.rel (0) target = $region81
    $region80: #{multi_head_transformer.1} parent=1 // pred_region
      %123 = dma.done [#allocation9], 16
    $region81: #{multi_head_transformer.1} parent=1 // pred_fallthru
      _
    // Predicated region
    $region82: #{multi_head_transformer.1} parent=1 // pred_check
      _
    $region83: #{multi_head_transformer.1} parent=1 // pred_check_branch
      %125 = sbr.rel (0) target = $region85
    $region84: #{multi_head_transformer.1} parent=1 // pred_region
      %126 = dma.done [#allocation9], 768
    $region85: #{multi_head_transformer.1} parent=1 // pred_fallthru
      _
    // Predicated region
    $region86: #{multi_head_transformer.1} parent=1 // pred_check
      _
    $region87: #{multi_head_transformer.1} parent=1 // pred_check_branch
      %128 = sbr.rel (0) target = $region89
    $region88: #{multi_head_transformer.1} parent=1 // pred_region
      %129 = dma.done [#allocation12], 1024
    $region89: #{multi_head_transformer.1} parent=1 // pred_fallthru
      _
    %v131 = vld [vmem:[#allocation2] sm:$0xff]
    %v132 = vld [vmem:[#allocation2 + $0x8] sm:$0xff]
    %v133 = vpack.c.bf16 %v132, %v131
    %v134 = vld [vmem:[%s1] sm:$0xf]
    %v135 = vld [vmem:[%s1 + $0x4] sm:$0xf]
    %v136 = vld [vmem:[%s1 + $0x8] sm:$0xf]
    %v137 = vld [vmem:[%s1 + $0xc] sm:$0xf]
    %v138 = vld [vmem:[%s2] sm:$0x1]
    %v140 = vlaneseq
    %v141 = vshrl.u32 %v140, 7
    %v142 = vsub.s32 0, %v141
    %v143 = vrot.slane %v138, %v142
    %v149 = vunpack.c.l.b16 %v134
    %v150 = vunpack.c.l.b16 %v135
    %v151 = vunpack.c.l.b16 %v136
    %v152 = vunpack.c.l.b16 %v137
    %v153 = vpack.c.b16 %v150, %v149
    %v154 = vpack.c.b16 %v152, %v151
    %vm157 = vcmask 261120
    %v159 = vsel %vm157, %v133, 0
    %161 = vmatprep.subr.bf16.mxu0 0
    %162 = vmatpush1.bf16.msra.mxu0 %v153
    %163 = vmatprep.subr.bf16.mxu0 0
    %164 = vmatpush1.bf16.msra.mxu0 %v154
    %165 = vmatprep.subr.bf16.mxu0 0
    %166 = vmatpush1.bf16.msra.mxu0 0
    %167 = vmatprep.subr.bf16.mxu0 0
    %168 = vmatpush1.bf16.msra.mxu0 0
    %169 = vmatprep.subr.bf16.mxu0 0
    %170 = vmatpush1.bf16.msra.mxu0 0
    %171 = vmatprep.subr.bf16.mxu0 0
    %172 = vmatpush1.bf16.msra.mxu0 0
    %173 = vmatprep.subr.bf16.mxu0 0
    %174 = vmatpush1.bf16.msra.mxu0 0
    %175 = vmatprep.subr.bf16.mxu0 0
    %176 = vmatpush1.bf16.msra.mxu0 0
    %177 = vmatprep.subr.bf16.mxu0 0
    %178 = vmatpush1.bf16.msra.mxu0 0
    %179 = vmatprep.subr.bf16.mxu0 0
    %180 = vmatpush1.bf16.msra.mxu0 0
    %181 = vmatprep.subr.bf16.mxu0 0
    %182 = vmatpush1.bf16.msra.mxu0 0
    %183 = vmatprep.subr.bf16.mxu0 0
    %184 = vmatpush1.bf16.msra.mxu0 0
    %185 = vmatprep.subr.bf16.mxu0 0
    %186 = vmatpush1.bf16.msra.mxu0 0
    %187 = vmatprep.subr.bf16.mxu0 0
    %188 = vmatpush1.bf16.msra.mxu0 0
    %189 = vmatprep.subr.bf16.mxu0 0
    %190 = vmatpush1.bf16.msra.mxu0 0
    %191 = vmatprep.subr.bf16.mxu0 0
    %192 = vmatpush1.bf16.msra.mxu0 0
    %193 = vmatprep.mubr.bf16.mxu0 0
    %194 = vmatmul.mubr.bf16.gmra.mrb[0].mxu0 %v159
    %v195 = vpop.f32.mrb[0].mxu0
    %v196 = vadd.f32 %v143, %v195
    %v197 = vpop.f32.mrb[0].mxu0
    %v198 = vpop.f32.mrb[0].mxu0
    %v199 = vadd.f32 %v143, %v198
    %v200 = vpop.f32.mrb[0].mxu0
    %201 = vdwg.mxu0
    %v202 = vld [vmem:[%s11] sm:$0xf]
    %v203 = vld [vmem:[%s11 + $0x4] sm:$0xf]
    %v204 = vld [vmem:[%s11 + $0x8] sm:$0xf]
    %v205 = vld [vmem:[%s11 + $0xc] sm:$0xf]
    %v206 = vld [vmem:[%s11 + $0x10] sm:$0xf]
    %v207 = vld [vmem:[%s11 + $0x14] sm:$0xf]
    %v208 = vld [vmem:[%s11 + $0x18] sm:$0xf]
    %v209 = vld [vmem:[%s11 + $0x1c] sm:$0xf]
    %v210 = vld [vmem:[%s11 + $0x20] sm:$0xf]
    %v211 = vld [vmem:[%s11 + $0x24] sm:$0xf]
    %v212 = vld [vmem:[%s11 + $0x28] sm:$0xf]
    %v213 = vld [vmem:[%s11 + $0x2c] sm:$0xf]
    %v214 = vld [vmem:[%s11 + $0x30] sm:$0xf]
    %v215 = vld [vmem:[%s11 + $0x34] sm:$0xf]
    %v216 = vld [vmem:[%s11 + $0x38] sm:$0xf]
    %v217 = vld [vmem:[%s11 + $0x3c] sm:$0xf]
    %v218 = vld [vmem:[%s11 + $0x40] sm:$0xf]
    %v219 = vld [vmem:[%s11 + $0x44] sm:$0xf]
    %v220 = vld [vmem:[%s11 + $0x48] sm:$0xf]
    %v221 = vld [vmem:[%s11 + $0x4c] sm:$0xf]
    %v222 = vld [vmem:[%s11 + $0x50] sm:$0xf]
    %v223 = vld [vmem:[%s11 + $0x54] sm:$0xf]
    %v224 = vld [vmem:[%s11 + $0x58] sm:$0xf]
    %v225 = vld [vmem:[%s11 + $0x5c] sm:$0xf]
    %v226 = vpack.c.bf16 %v199, %v196
    %v251 = vunpack.c.l.b16 %v202
    %v252 = vunpack.c.l.b16 %v203
    %v253 = vunpack.c.l.b16 %v204
    %v254 = vunpack.c.l.b16 %v205
    %v255 = vunpack.c.l.b16 %v206
    %v256 = vunpack.c.l.b16 %v207
    %v257 = vunpack.c.l.b16 %v208
    %v258 = vunpack.c.l.b16 %v209
    %v259 = vunpack.c.l.b16 %v210
    %v260 = vunpack.c.l.b16 %v211
    %v261 = vunpack.c.l.b16 %v212
    %v262 = vunpack.c.l.b16 %v213
    %v263 = vunpack.c.l.b16 %v214
    %v264 = vunpack.c.l.b16 %v215
    %v265 = vunpack.c.l.b16 %v216
    %v266 = vunpack.c.l.b16 %v217
    %v267 = vunpack.c.l.b16 %v218
    %v268 = vunpack.c.l.b16 %v219
    %v269 = vunpack.c.l.b16 %v220
    %v270 = vunpack.c.l.b16 %v221
    %v271 = vunpack.c.l.b16 %v222
    %v272 = vunpack.c.l.b16 %v223
    %v273 = vunpack.c.l.b16 %v224
    %v274 = vunpack.c.l.b16 %v225
    %v275 = vpack.c.b16 %v252, %v251
    %v276 = vpack.c.b16 %v254, %v253
    %v277 = vpack.c.b16 %v256, %v255
    %v278 = vpack.c.b16 %v258, %v257
    %v279 = vpack.c.b16 %v260, %v259
    %v280 = vpack.c.b16 %v262, %v261
    %v281 = vpack.c.b16 %v264, %v263
    %v282 = vpack.c.b16 %v266, %v265
    %v283 = vpack.c.b16 %v268, %v267
    %v284 = vpack.c.b16 %v270, %v269
    %v285 = vpack.c.b16 %v272, %v271
    %v286 = vpack.c.b16 %v274, %v273
    %vm287 = vcmask 130048
    %v289 = vsel %vm287, %v275, 0
    %v292 = vsel %vm287, %v276, 0
    %v295 = vsel %vm287, %v277, 0
    %v298 = vsel %vm287, %v278, 0
    %v301 = vsel %vm287, %v279, 0
    %v304 = vsel %vm287, %v280, 0
    %v307 = vsel %vm287, %v281, 0
    %v310 = vsel %vm287, %v282, 0
    %v313 = vsel %vm287, %v283, 0
    %v316 = vsel %vm287, %v284, 0
    %v319 = vsel %vm287, %v285, 0
    %v322 = vsel %vm287, %v286, 0
    %324 = vmatprep.subr.bf16.mxu0 0
    %325 = vmatpush1.bf16.msra.mxu0 %v226
    %326 = vmatprep.subr.bf16.mxu0 0
    %327 = vmatpush1.bf16.msra.mxu0 0
    %328 = vmatprep.subr.bf16.mxu0 0
    %329 = vmatpush1.bf16.msra.mxu0 0
    %330 = vmatprep.subr.bf16.mxu0 0
    %331 = vmatpush1.bf16.msra.mxu0 0
    %332 = vmatprep.subr.bf16.mxu0 0
    %333 = vmatpush1.bf16.msra.mxu0 0
    %334 = vmatprep.subr.bf16.mxu0 0
    %335 = vmatpush1.bf16.msra.mxu0 0
    %336 = vmatprep.subr.bf16.mxu0 0
    %337 = vmatpush1.bf16.msra.mxu0 0
    %338 = vmatprep.subr.bf16.mxu0 0
    %339 = vmatpush1.bf16.msra.mxu0 0
    %340 = vmatprep.subr.bf16.mxu0 0
    %341 = vmatpush1.bf16.msra.mxu0 0
    %342 = vmatprep.subr.bf16.mxu0 0
    %343 = vmatpush1.bf16.msra.mxu0 0
    %344 = vmatprep.subr.bf16.mxu0 0
    %345 = vmatpush1.bf16.msra.mxu0 0
    %346 = vmatprep.subr.bf16.mxu0 0
    %347 = vmatpush1.bf16.msra.mxu0 0
    %348 = vmatprep.subr.bf16.mxu0 0
    %349 = vmatpush1.bf16.msra.mxu0 0
    %350 = vmatprep.subr.bf16.mxu0 0
    %351 = vmatpush1.bf16.msra.mxu0 0
    %352 = vmatprep.subr.bf16.mxu0 0
    %353 = vmatpush1.bf16.msra.mxu0 0
    %354 = vmatprep.subr.bf16.mxu0 0
    %355 = vmatpush1.bf16.msra.mxu0 0
    %356 = vmatprep.mubr.bf16.mxu0 0
    %357 = vmatmul.mubr.bf16.gmra.mrb[0].mxu0 %v289
    %v358 = vpop.f32.mrb[0].mxu0
    %v359 = vadd.f32 0.0, %v358
    %v360 = vpop.f32.mrb[0].mxu0
    %v361 = vpop.f32.mrb[0].mxu0
    %v362 = vadd.f32 0.0, %v361
    %v363 = vpop.f32.mrb[0].mxu0
    %364 = vmatprep.mubr.bf16.mxu0 0
    %365 = vmatmul.mubr.bf16.gmra.mrb[0].mxu0 %v292
    %v366 = vpop.f32.mrb[0].mxu0
    %v367 = vadd.f32 0.0, %v366
    %v368 = vpop.f32.mrb[0].mxu0
    %v369 = vpop.f32.mrb[0].mxu0
    %v370 = vadd.f32 0.0, %v369
    %v371 = vpop.f32.mrb[0].mxu0
    %372 = vmatprep.mubr.bf16.mxu0 0
    %373 = vmatmul.mubr.bf16.gmra.mrb[0].mxu0 %v295
    %v374 = vpop.f32.mrb[0].mxu0
    %v375 = vadd.f32 0.0, %v374
    %v376 = vpop.f32.mrb[0].mxu0
    %v377 = vpop.f32.mrb[0].mxu0
    %v378 = vadd.f32 0.0, %v377
    %v379 = vpop.f32.mrb[0].mxu0
    %380 = vmatprep.mubr.bf16.mxu0 0
    %381 = vmatmul.mubr.bf16.gmra.mrb[0].mxu0 %v298
    %v382 = vpop.f32.mrb[0].mxu0
    %v383 = vadd.f32 0.0, %v382
    %v384 = vpop.f32.mrb[0].mxu0
    %v385 = vpop.f32.mrb[0].mxu0
    %v386 = vadd.f32 0.0, %v385
    %v387 = vpop.f32.mrb[0].mxu0
    %388 = vmatprep.mubr.bf16.mxu0 0
    %389 = vmatmul.mubr.bf16.gmra.mrb[0].mxu0 %v301
    %v390 = vpop.f32.mrb[0].mxu0
    %v391 = vadd.f32 0.0, %v390
    %v392 = vpop.f32.mrb[0].mxu0
    %v393 = vpop.f32.mrb[0].mxu0
    %v394 = vadd.f32 0.0, %v393
    %v395 = vpop.f32.mrb[0].mxu0
    %396 = vmatprep.mubr.bf16.mxu0 0
    %397 = vmatmul.mubr.bf16.gmra.mrb[0].mxu0 %v304
    %v398 = vpop.f32.mrb[0].mxu0
    %v399 = vadd.f32 0.0, %v398
    %v400 = vpop.f32.mrb[0].mxu0
    %v401 = vpop.f32.mrb[0].mxu0
    %v402 = vadd.f32 0.0, %v401
    %v403 = vpop.f32.mrb[0].mxu0
    %404 = vmatprep.mubr.bf16.mxu0 0
    %405 = vmatmul.mubr.bf16.gmra.mrb[0].mxu0 %v307
    %v406 = vpop.f32.mrb[0].mxu0
    %v407 = vadd.f32 0.0, %v406
    %v408 = vpop.f32.mrb[0].mxu0
    %v409 = vpop.f32.mrb[0].mxu0
    %v410 = vadd.f32 0.0, %v409
    %v411 = vpop.f32.mrb[0].mxu0
    %412 = vmatprep.mubr.bf16.mxu0 0
    %413 = vmatmul.mubr.bf16.gmra.mrb[0].mxu0 %v310
    %v414 = vpop.f32.mrb[0].mxu0
    %v415 = vadd.f32 0.0, %v414
    %v416 = vpop.f32.mrb[0].mxu0
    %v417 = vpop.f32.mrb[0].mxu0
    %v418 = vadd.f32 0.0, %v417
    %v419 = vpop.f32.mrb[0].mxu0
    %420 = vmatprep.mubr.bf16.mxu0 0
    %421 = vmatmul.mubr.bf16.gmra.mrb[0].mxu0 %v313
    %v422 = vpop.f32.mrb[0].mxu0
    %v423 = vadd.f32 0.0, %v422
    %v424 = vpop.f32.mrb[0].mxu0
    %v425 = vpop.f32.mrb[0].mxu0
    %v426 = vadd.f32 0.0, %v425
    %v427 = vpop.f32.mrb[0].mxu0
    %428 = vmatprep.mubr.bf16.mxu0 0
    %429 = vmatmul.mubr.bf16.gmra.mrb[0].mxu0 %v316
    %v430 = vpop.f32.mrb[0].mxu0
    %v431 = vadd.f32 0.0, %v430
    %v432 = vpop.f32.mrb[0].mxu0
    %v433 = vpop.f32.mrb[0].mxu0
    %v434 = vadd.f32 0.0, %v433
    %v435 = vpop.f32.mrb[0].mxu0
    %436 = vmatprep.mubr.bf16.mxu0 0
    %437 = vmatmul.mubr.bf16.gmra.mrb[0].mxu0 %v319
    %v438 = vpop.f32.mrb[0].mxu0
    %v439 = vadd.f32 0.0, %v438
    %v440 = vpop.f32.mrb[0].mxu0
    %v441 = vpop.f32.mrb[0].mxu0
    %v442 = vadd.f32 0.0, %v441
    %v443 = vpop.f32.mrb[0].mxu0
    %444 = vmatprep.mubr.bf16.mxu0 0
    %445 = vmatmul.mubr.bf16.gmra.mrb[0].mxu0 %v322
    %v446 = vpop.f32.mrb[0].mxu0
    %v447 = vadd.f32 0.0, %v446
    %v448 = vpop.f32.mrb[0].mxu0
    %v449 = vpop.f32.mrb[0].mxu0
    %v450 = vadd.f32 0.0, %v449
    %v451 = vpop.f32.mrb[0].mxu0
    %452 = vdwg.mxu0
    %v453 = vld [vmem:[%s12] sm:$0xff]
    %v454 = vld [vmem:[%s12 + $0x8] sm:$0xff]
    %v455 = vld [vmem:[%s12 + $0x10] sm:$0xff]
    %v456 = vld [vmem:[%s12 + $0x18] sm:$0xff]
    %v457 = vld [vmem:[%s12 + $0x20] sm:$0xff]
    %v458 = vld [vmem:[%s12 + $0x28] sm:$0xff]
    %v459 = vld [vmem:[%s12 + $0x30] sm:$0xff]
    %v460 = vld [vmem:[%s12 + $0x38] sm:$0xff]
    %v461 = vld [vmem:[%s12 + $0x40] sm:$0xff]
    %v462 = vld [vmem:[%s12 + $0x48] sm:$0xff]
    %v463 = vld [vmem:[%s12 + $0x50] sm:$0xff]
    %v464 = vld [vmem:[%s12 + $0x58] sm:$0xff]
    %v465 = vld [vmem:[%s12 + $0x60] sm:$0xff]
    %v466 = vld [vmem:[%s12 + $0x68] sm:$0xff]
    %v467 = vld [vmem:[%s12 + $0x70] sm:$0xff]
    %v468 = vld [vmem:[%s12 + $0x78] sm:$0xff]
    %v469 = vld [vmem:[%s12 + $0x80] sm:$0xff]
    %v470 = vld [vmem:[%s12 + $0x88] sm:$0xff]
    %v471 = vld [vmem:[%s12 + $0x90] sm:$0xff]
    %v472 = vld [vmem:[%s12 + $0x98] sm:$0xff]
    %v473 = vld [vmem:[%s12 + $0xa0] sm:$0xff]
    %v474 = vld [vmem:[%s12 + $0xa8] sm:$0xff]
    %v475 = vld [vmem:[%s12 + $0xb0] sm:$0xff]
    %v476 = vld [vmem:[%s12 + $0xb8] sm:$0xff]
    %v477 = vmul.f32 %v359, %v453
    %v478 = vmul.f32 %v362, %v454
    %v479 = vmul.f32 %v367, %v455
    %v480 = vmul.f32 %v370, %v456
    %v481 = vmul.f32 %v375, %v457
    %v482 = vmul.f32 %v378, %v458
    %v483 = vmul.f32 %v383, %v459
    %v484 = vmul.f32 %v386, %v460
    %v485 = vmul.f32 %v391, %v461
    %v486 = vmul.f32 %v394, %v462
    %v487 = vmul.f32 %v399, %v463
    %v488 = vmul.f32 %v402, %v464
    %v489 = vmul.f32 %v407, %v465
    %v490 = vmul.f32 %v410, %v466
    %v491 = vmul.f32 %v415, %v467
    %v492 = vmul.f32 %v418, %v468
    %v493 = vmul.f32 %v423, %v469
    %v494 = vmul.f32 %v426, %v470
    %v495 = vmul.f32 %v431, %v471
    %v496 = vmul.f32 %v434, %v472
    %v497 = vmul.f32 %v439, %v473
    %v498 = vmul.f32 %v442, %v474
    %v499 = vmul.f32 %v447, %v475
    %v500 = vmul.f32 %v450, %v476
    %v501 = vpack.c.bf16 %v478, %v477
    %v502 = vpack.c.bf16 %v480, %v479
    %v503 = vpack.c.bf16 %v482, %v481
    %v504 = vpack.c.bf16 %v484, %v483
    %v505 = vpack.c.bf16 %v486, %v485
    %v506 = vpack.c.bf16 %v488, %v487
    %v507 = vpack.c.bf16 %v490, %v489
    %v508 = vpack.c.bf16 %v492, %v491
    %v509 = vpack.c.bf16 %v494, %v493
    %v510 = vpack.c.bf16 %v496, %v495
    %v511 = vpack.c.bf16 %v498, %v497
    %v512 = vpack.c.bf16 %v500, %v499
    %v513 = vld [vmem:[#allocation10] sm:$0xf]
    %v514 = vld [vmem:[#allocation10 + $0x4] sm:$0xf]
    %v515 = vld [vmem:[#allocation10 + $0x8] sm:$0xf]
    %v516 = vld [vmem:[#allocation10 + $0xc] sm:$0xf]
    %v517 = vld [vmem:[#allocation10 + $0x10] sm:$0xf]
    %v518 = vld [vmem:[#allocation10 + $0x14] sm:$0xf]
    %v519 = vld [vmem:[#allocation10 + $0x18] sm:$0xf]
    %v520 = vld [vmem:[#allocation10 + $0x1c] sm:$0xf]
    %v521 = vld [vmem:[#allocation10 + $0x20] sm:$0xf]
    %v522 = vld [vmem:[#allocation10 + $0x24] sm:$0xf]
    %v523 = vld [vmem:[#allocation10 + $0x28] sm:$0xf]
    %v524 = vld [vmem:[#allocation10 + $0x2c] sm:$0xf]
    %v537 = vunpack.c.l.b16 %v513
    %v538 = vunpack.c.l.b16 %v514
    %v539 = vunpack.c.l.b16 %v515
    %v540 = vunpack.c.l.b16 %v516
    %v541 = vunpack.c.l.b16 %v517
    %v542 = vunpack.c.l.b16 %v518
    %v543 = vunpack.c.l.b16 %v519
    %v544 = vunpack.c.l.b16 %v520
    %v545 = vunpack.c.l.b16 %v521
    %v546 = vunpack.c.l.b16 %v522
    %v547 = vunpack.c.l.b16 %v523
    %v548 = vunpack.c.l.b16 %v524
    %v549 = vpack.c.b16 %v538, %v537
    %v550 = vpack.c.b16 %v540, %v539
    %v551 = vpack.c.b16 %v542, %v541
    %v552 = vpack.c.b16 %v544, %v543
    %v553 = vpack.c.b16 %v546, %v545
    %v554 = vpack.c.b16 %v548, %v547
    %vm561 = vcmask 785408
    %v563 = vsel %vm561, %v501, 0
    %v566 = vsel %vm561, %v502, 0
    %v569 = vsel %vm561, %v503, 0
    %v572 = vsel %vm561, %v504, 0
    %v575 = vsel %vm561, %v505, 0
    %v578 = vsel %vm561, %v506, 0
    %v581 = vsel %vm561, %v507, 0
    %v584 = vsel %vm561, %v508, 0
    %v587 = vsel %vm561, %v509, 0
    %v590 = vsel %vm561, %v510, 0
    %v593 = vsel %vm561, %v511, 0
    %v596 = vsel %vm561, %v512, 0
    %598 = vmatprep.subr.bf16.mxu0 0
    %599 = vmatpush1.bf16.msra.mxu0 %v549
    %600 = vmatprep.subr.bf16.mxu0 0
    %601 = vmatpush1.bf16.msra.mxu0 %v550
    %602 = vmatprep.subr.bf16.mxu0 0
    %603 = vmatpush1.bf16.msra.mxu0 %v551
    %604 = vmatprep.subr.bf16.mxu0 0
    %605 = vmatpush1.bf16.msra.mxu0 %v552
    %606 = vmatprep.subr.bf16.mxu0 0
    %607 = vmatpush1.bf16.msra.mxu0 %v553
    %608 = vmatprep.subr.bf16.mxu0 0
    %609 = vmatpush1.bf16.msra.mxu0 %v554
    %610 = vmatprep.subr.bf16.mxu0 0
    %611 = vmatpush1.bf16.msra.mxu0 0
    %612 = vmatprep.subr.bf16.mxu0 0
    %613 = vmatpush1.bf16.msra.mxu0 0
    %614 = vmatprep.subr.bf16.mxu0 0
    %615 = vmatpush1.bf16.msra.mxu0 0
    %616 = vmatprep.subr.bf16.mxu0 0
    %617 = vmatpush1.bf16.msra.mxu0 0
    %618 = vmatprep.subr.bf16.mxu0 0
    %619 = vmatpush1.bf16.msra.mxu0 0
    %620 = vmatprep.subr.bf16.mxu0 0
    %621 = vmatpush1.bf16.msra.mxu0 0
    %622 = vmatprep.subr.bf16.mxu0 0
    %623 = vmatpush1.bf16.msra.mxu0 0
    %624 = vmatprep.subr.bf16.mxu0 0
    %625 = vmatpush1.bf16.msra.mxu0 0
    %626 = vmatprep.subr.bf16.mxu0 0
    %627 = vmatpush1.bf16.msra.mxu0 0
    %628 = vmatprep.subr.bf16.mxu0 0
    %629 = vmatpush1.bf16.msra.mxu0 0
    %630 = vmatprep.mubr.bf16.mxu0 0
    %631 = vmatmul.mubr.bf16.gmra.mrb[0].mxu0 %v563
    %v632 = vpop.f32.mrb[0].mxu0
    %v633 = vadd.f32 0.0, %v632
    %v634 = vpop.f32.mrb[0].mxu0
    %v635 = vpop.f32.mrb[0].mxu0
    %v636 = vadd.f32 0.0, %v635
    %v637 = vpop.f32.mrb[0].mxu0
    %638 = vmatprep.mubr.bf16.mxu0 0
    %639 = vmatmul.mubr.bf16.gmra.mrb[0].mxu0 %v566
    %v640 = vpop.f32.mrb[0].mxu0
    %v641 = vadd.f32 0.0, %v640
    %v642 = vpop.f32.mrb[0].mxu0
    %v643 = vpop.f32.mrb[0].mxu0
    %v644 = vadd.f32 0.0, %v643
    %v645 = vpop.f32.mrb[0].mxu0
    %646 = vmatprep.mubr.bf16.mxu0 0
    %647 = vmatmul.mubr.bf16.gmra.mrb[0].mxu0 %v569
    %v648 = vpop.f32.mrb[0].mxu0
    %v649 = vadd.f32 0.0, %v648
    %v650 = vpop.f32.mrb[0].mxu0
    %v651 = vpop.f32.mrb[0].mxu0
    %v652 = vadd.f32 0.0, %v651
    %v653 = vpop.f32.mrb[0].mxu0
    %654 = vmatprep.mubr.bf16.mxu0 0
    %655 = vmatmul.mubr.bf16.gmra.mrb[0].mxu0 %v572
    %v656 = vpop.f32.mrb[0].mxu0
    %v657 = vadd.f32 0.0, %v656
    %v658 = vpop.f32.mrb[0].mxu0
    %v659 = vpop.f32.mrb[0].mxu0
    %v660 = vadd.f32 0.0, %v659
    %v661 = vpop.f32.mrb[0].mxu0
    %662 = vmatprep.mubr.bf16.mxu0 0
    %663 = vmatmul.mubr.bf16.gmra.mrb[0].mxu0 %v575
    %v664 = vpop.f32.mrb[0].mxu0
    %v665 = vadd.f32 0.0, %v664
    %v666 = vpop.f32.mrb[0].mxu0
    %v667 = vpop.f32.mrb[0].mxu0
    %v668 = vadd.f32 0.0, %v667
    %v669 = vpop.f32.mrb[0].mxu0
    %670 = vmatprep.mubr.bf16.mxu0 0
    %671 = vmatmul.mubr.bf16.gmra.mrb[0].mxu0 %v578
    %v672 = vpop.f32.mrb[0].mxu0
    %v673 = vadd.f32 0.0, %v672
    %v674 = vpop.f32.mrb[0].mxu0
    %v675 = vpop.f32.mrb[0].mxu0
    %v676 = vadd.f32 0.0, %v675
    %v677 = vpop.f32.mrb[0].mxu0
    %678 = vmatprep.mubr.bf16.mxu0 0
    %679 = vmatmul.mubr.bf16.gmra.mrb[0].mxu0 %v581
    %v680 = vpop.f32.mrb[0].mxu0
    %v681 = vadd.f32 0.0, %v680
    %v682 = vpop.f32.mrb[0].mxu0
    %v683 = vpop.f32.mrb[0].mxu0
    %v684 = vadd.f32 0.0, %v683
    %v685 = vpop.f32.mrb[0].mxu0
    %686 = vmatprep.mubr.bf16.mxu0 0
    %687 = vmatmul.mubr.bf16.gmra.mrb[0].mxu0 %v584
    %v688 = vpop.f32.mrb[0].mxu0
    %v689 = vadd.f32 0.0, %v688
    %v690 = vpop.f32.mrb[0].mxu0
    %v691 = vpop.f32.mrb[0].mxu0
    %v692 = vadd.f32 0.0, %v691
    %v693 = vpop.f32.mrb[0].mxu0
    %694 = vmatprep.mubr.bf16.mxu0 0
    %695 = vmatmul.mubr.bf16.gmra.mrb[0].mxu0 %v587
    %v696 = vpop.f32.mrb[0].mxu0
    %v697 = vadd.f32 0.0, %v696
    %v698 = vpop.f32.mrb[0].mxu0
    %v699 = vpop.f32.mrb[0].mxu0
    %v700 = vadd.f32 0.0, %v699
    %v701 = vpop.f32.mrb[0].mxu0
    %702 = vmatprep.mubr.bf16.mxu0 0
    %703 = vmatmul.mubr.bf16.gmra.mrb[0].mxu0 %v590
    %v704 = vpop.f32.mrb[0].mxu0
    %v705 = vadd.f32 0.0, %v704
    %v706 = vpop.f32.mrb[0].mxu0
    %v707 = vpop.f32.mrb[0].mxu0
    %v708 = vadd.f32 0.0, %v707
    %v709 = vpop.f32.mrb[0].mxu0
    %710 = vmatprep.mubr.bf16.mxu0 0
    %711 = vmatmul.mubr.bf16.gmra.mrb[0].mxu0 %v593
    %v712 = vpop.f32.mrb[0].mxu0
    %v713 = vadd.f32 0.0, %v712
    %v714 = vpop.f32.mrb[0].mxu0
    %v715 = vpop.f32.mrb[0].mxu0
    %v716 = vadd.f32 0.0, %v715
    %v717 = vpop.f32.mrb[0].mxu0
    %718 = vmatprep.mubr.bf16.mxu0 0
    %719 = vmatmul.mubr.bf16.gmra.mrb[0].mxu0 %v596
    %v720 = vpop.f32.mrb[0].mxu0
    %v721 = vadd.f32 0.0, %v720
    %v722 = vpop.f32.mrb[0].mxu0
    %v723 = vpop.f32.mrb[0].mxu0
    %v724 = vadd.f32 0.0, %v723
    %v725 = vpop.f32.mrb[0].mxu0
    %726 = vdwg.mxu0
    %v727 = vpack.c.bf16 %v636, %v633
    %v728 = vpack.c.bf16 %v644, %v641
    %v729 = vpack.c.bf16 %v652, %v649
    %v730 = vpack.c.bf16 %v660, %v657
    %v731 = vpack.c.bf16 %v668, %v665
    %v732 = vpack.c.bf16 %v676, %v673
    %v733 = vpack.c.bf16 %v684, %v681
    %v734 = vpack.c.bf16 %v692, %v689
    %v735 = vpack.c.bf16 %v700, %v697
    %v736 = vpack.c.bf16 %v708, %v705
    %v737 = vpack.c.bf16 %v716, %v713
    %v738 = vpack.c.bf16 %v724, %v721
    %vm739 = vcmask 64512
    %v741 = vsel %vm739, %v727, 0
    %v744 = vsel %vm739, %v728, 0
    %v747 = vsel %vm739, %v729, 0
    %v750 = vsel %vm739, %v730, 0
    %v753 = vsel %vm739, %v731, 0
    %v756 = vsel %vm739, %v732, 0
    %v759 = vsel %vm739, %v733, 0
    %v762 = vsel %vm739, %v734, 0
    %764 = vmatprep.subr.bf16.mxu0 0
    %765 = vmatpush1.bf16.xpose.msra.mxu0 %v753
    %766 = vmatprep.subr.bf16.mxu0 0
    %767 = vmatpush1.bf16.xpose.msra.mxu0 %v756
    %768 = vmatprep.subr.bf16.mxu0 0
    %769 = vmatpush1.bf16.xpose.msra.mxu0 %v759
    %770 = vmatprep.subr.bf16.mxu0 0
    %771 = vmatpush1.bf16.xpose.msra.mxu0 %v762
    %772 = vmatprep.subr.bf16.mxu0 0
    %773 = vmatpush1.bf16.xpose.msra.mxu0 0
    %774 = vmatprep.subr.bf16.mxu0 0
    %775 = vmatpush1.bf16.xpose.msra.mxu0 0
    %776 = vmatprep.subr.bf16.mxu0 0
    %777 = vmatpush1.bf16.xpose.msra.mxu0 0
    %778 = vmatprep.subr.bf16.mxu0 0
    %779 = vmatpush1.bf16.xpose.msra.mxu0 0
    %780 = vmatprep.subr.bf16.mxu0 0
    %781 = vmatpush1.bf16.xpose.msra.mxu0 0
    %782 = vmatprep.subr.bf16.mxu0 0
    %783 = vmatpush1.bf16.xpose.msra.mxu0 0
    %784 = vmatprep.subr.bf16.mxu0 0
    %785 = vmatpush1.bf16.xpose.msra.mxu0 0
    %786 = vmatprep.subr.bf16.mxu0 0
    %787 = vmatpush1.bf16.xpose.msra.mxu0 0
    %788 = vmatprep.subr.bf16.mxu0 0
    %789 = vmatpush1.bf16.xpose.msra.mxu0 0
    %790 = vmatprep.subr.bf16.mxu0 0
    %791 = vmatpush1.bf16.xpose.msra.mxu0 0
    %792 = vmatprep.subr.bf16.mxu0 0
    %793 = vmatpush1.bf16.xpose.msra.mxu0 0
    %794 = vmatprep.subr.bf16.mxu0 0
    %795 = vmatpush1.bf16.xpose.msra.mxu0 0
    %796 = vmatprep.mubr.bf16.mxu0 0
    %797 = vmatmul.mubr.bf16.gmra.mrb[0].mxu0 %v741
    %v798 = vpop.f32.mrb[0].mxu0
    %v799 = vadd.f32 0.0, %v798
    %v800 = vpop.f32.mrb[0].mxu0
    %v801 = vpop.f32.mrb[0].mxu0
    %v802 = vadd.f32 0.0, %v801
    %v803 = vpop.f32.mrb[0].mxu0
    %804 = vmatprep.mubr.bf16.mxu0 0
    %805 = vmatmul.mubr.bf16.gmra.mrb[0].mxu0 %v744
    %v806 = vpop.f32.mrb[0].mxu0
    %v807 = vadd.f32 0.0, %v806
    %v808 = vpop.f32.mrb[0].mxu0
    %v809 = vpop.f32.mrb[0].mxu0
    %v810 = vadd.f32 0.0, %v809
    %v811 = vpop.f32.mrb[0].mxu0
    %812 = vmatprep.mubr.bf16.mxu0 0
    %813 = vmatmul.mubr.bf16.gmra.mrb[0].mxu0 %v747
    %v814 = vpop.f32.mrb[0].mxu0
    %v815 = vadd.f32 0.0, %v814
    %v816 = vpop.f32.mrb[0].mxu0
    %v817 = vpop.f32.mrb[0].mxu0
    %v818 = vadd.f32 0.0, %v817
    %v819 = vpop.f32.mrb[0].mxu0
    %820 = vmatprep.mubr.bf16.mxu0 0
    %821 = vmatmul.mubr.bf16.gmra.mrb[0].mxu0 %v750
    %v822 = vpop.f32.mrb[0].mxu0
    %v823 = vadd.f32 0.0, %v822
    %v824 = vpop.f32.mrb[0].mxu0
    %v825 = vpop.f32.mrb[0].mxu0
    %v826 = vadd.f32 0.0, %v825
    %v827 = vpop.f32.mrb[0].mxu0
    %828 = vdwg.mxu0
    %v829 = vmul.f32 %v799, 0.17677669
    %v830 = vmul.f32 %v802, 0.17677669
    %v831 = vmul.f32 %v807, 0.17677669
    %v832 = vmul.f32 %v810, 0.17677669
    %v833 = vmul.f32 %v815, 0.17677669
    %v834 = vmul.f32 %v818, 0.17677669
    %v835 = vmul.f32 %v823, 0.17677669
    %v836 = vmul.f32 %v826, 0.17677669
    %v837 = vld [vmem:[#allocation11] sm:$0xff]
    %v838 = vld [vmem:[#allocation11 + $0x8] sm:$0xff]
    %v839 = vld [vmem:[#allocation11 + $0x10] sm:$0xff]
    %v840 = vld [vmem:[#allocation11 + $0x18] sm:$0xff]
    %v841 = vld [vmem:[#allocation11 + $0x20] sm:$0xff]
    %v842 = vld [vmem:[#allocation11 + $0x28] sm:$0xff]
    %v843 = vld [vmem:[#allocation11 + $0x30] sm:$0xff]
    %v844 = vld [vmem:[#allocation11 + $0x38] sm:$0xff]
    %v845 = vadd.f32 %v829, %v837
    %v846 = vadd.f32 %v830, %v838
    %v847 = vadd.f32 %v831, %v839
    %v848 = vadd.f32 %v832, %v840
    %v849 = vadd.f32 %v833, %v841
    %v850 = vadd.f32 %v834, %v842
    %v851 = vadd.f32 %v835, %v843
    %v852 = vadd.f32 %v836, %v844
    %vm853 = vcmask 523264
    %v854 = vsel %vm853, %v845, -inf
    %855 = vmax.xlane.f32.xlu0 %v854
    %v856 = vpop.xlane.xlu0 %855
    %v857 = vsel %vm853, %v846, -inf
    %858 = vmax.xlane.f32.xlu0 %v857
    %v859 = vpop.xlane.xlu0 %858
    %v860 = vsel %vm853, %v847, -inf
    %861 = vmax.xlane.f32.xlu0 %v860
    %v862 = vpop.xlane.xlu0 %861
    %v863 = vsel %vm853, %v848, -inf
    %864 = vmax.xlane.f32.xlu0 %v863
    %v865 = vpop.xlane.xlu0 %864
    %v866 = vsel %vm853, %v849, -inf
    %867 = vmax.xlane.f32.xlu0 %v866
    %v868 = vpop.xlane.xlu0 %867
    %v869 = vsel %vm853, %v850, -inf
    %870 = vmax.xlane.f32.xlu0 %v869
    %v871 = vpop.xlane.xlu0 %870
    %v872 = vsel %vm853, %v851, -inf
    %873 = vmax.xlane.f32.xlu0 %v872
    %v874 = vpop.xlane.xlu0 %873
    %v875 = vsel %vm853, %v852, -inf
    %876 = vmax.xlane.f32.xlu0 %v875
    %v877 = vpop.xlane.xlu0 %876
    %v878 = vsub.f32 %v845, %v856
    %v879 = vsub.f32 %v846, %v859
    %v880 = vsub.f32 %v847, %v862
    %v881 = vsub.f32 %v848, %v865
    %v882 = vsub.f32 %v849, %v868
    %v883 = vsub.f32 %v850, %v871
    %v884 = vsub.f32 %v851, %v874
    %v885 = vsub.f32 %v852, %v877
    %v886 = vmul.f32 %v878, 1.442695
    %v887 = vpow.pop %v886
    %v888 = vmul.f32 %v879, 1.442695
    %v889 = vpow.pop %v888
    %v890 = vmul.f32 %v880, 1.442695
    %v891 = vpow.pop %v890
    %v892 = vmul.f32 %v881, 1.442695
    %v893 = vpow.pop %v892
    %v894 = vmul.f32 %v882, 1.442695
    %v895 = vpow.pop %v894
    %v896 = vmul.f32 %v883, 1.442695
    %v897 = vpow.pop %v896
    %v898 = vmul.f32 %v884, 1.442695
    %v899 = vpow.pop %v898
    %v900 = vmul.f32 %v885, 1.442695
    %v901 = vpow.pop %v900
    %v902 = vsel %vm853, %v887, 0.0
    %903 = vadd.xlane.f32.xlu0 %v902
    %v904 = vpop.xlane.xlu0 %903
    %v905 = vsel %vm853, %v889, 0.0
    %906 = vadd.xlane.f32.xlu0 %v905
    %v907 = vpop.xlane.xlu0 %906
    %v908 = vsel %vm853, %v891, 0.0
    %909 = vadd.xlane.f32.xlu0 %v908
    %v910 = vpop.xlane.xlu0 %909
    %v911 = vsel %vm853, %v893, 0.0
    %912 = vadd.xlane.f32.xlu0 %v911
    %v913 = vpop.xlane.xlu0 %912
    %v914 = vsel %vm853, %v895, 0.0
    %915 = vadd.xlane.f32.xlu0 %v914
    %v916 = vpop.xlane.xlu0 %915
    %v917 = vsel %vm853, %v897, 0.0
    %918 = vadd.xlane.f32.xlu0 %v917
    %v919 = vpop.xlane.xlu0 %918
    %v920 = vsel %vm853, %v899, 0.0
    %921 = vadd.xlane.f32.xlu0 %v920
    %v922 = vpop.xlane.xlu0 %921
    %v923 = vsel %vm853, %v901, 0.0
    %924 = vadd.xlane.f32.xlu0 %v923
    %v925 = vpop.xlane.xlu0 %924
    %v926 = vrcp.pop %v904
    %v927 = vrcp.pop %v907
    %v928 = vrcp.pop %v910
    %v929 = vrcp.pop %v913
    %v930 = vrcp.pop %v916
    %v931 = vrcp.pop %v919
    %v932 = vrcp.pop %v922
    %v933 = vrcp.pop %v925
    %v934 = vmul.f32 %v887, %v926
    %v935 = vmul.f32 %v889, %v927
    %v936 = vmul.f32 %v891, %v928
    %v937 = vmul.f32 %v893, %v929
    %v938 = vmul.f32 %v895, %v930
    %v939 = vmul.f32 %v897, %v931
    %v940 = vmul.f32 %v899, %v932
    %v941 = vmul.f32 %v901, %v933
    %v942 = vpack.c.bf16 %v935, %v934
    %v943 = vpack.c.bf16 %v937, %v936
    %v944 = vpack.c.bf16 %v939, %v938
    %v945 = vpack.c.bf16 %v941, %v940
    %v947 = vsel %vm853, %v942, 0
    %v950 = vsel %vm853, %v943, 0
    %v953 = vsel %vm853, %v944, 0
    %v956 = vsel %vm853, %v945, 0
    %958 = vmatprep.subr.bf16.mxu0 0
    %959 = vmatpush1.bf16.msra.mxu0 %v735
    %960 = vmatprep.subr.bf16.mxu0 0
    %961 = vmatpush1.bf16.msra.mxu0 %v736
    %962 = vmatprep.subr.bf16.mxu0 0
    %963 = vmatpush1.bf16.msra.mxu0 %v737
    %964 = vmatprep.subr.bf16.mxu0 0
    %965 = vmatpush1.bf16.msra.mxu0 %v738
    %966 = vmatprep.subr.bf16.mxu0 0
    %967 = vmatpush1.bf16.msra.mxu0 0
    %968 = vmatprep.subr.bf16.mxu0 0
    %969 = vmatpush1.bf16.msra.mxu0 0
    %970 = vmatprep.subr.bf16.mxu0 0
    %971 = vmatpush1.bf16.msra.mxu0 0
    %972 = vmatprep.subr.bf16.mxu0 0
    %973 = vmatpush1.bf16.msra.mxu0 0
    %974 = vmatprep.subr.bf16.mxu0 0
    %975 = vmatpush1.bf16.msra.mxu0 0
    %976 = vmatprep.subr.bf16.mxu0 0
    %977 = vmatpush1.bf16.msra.mxu0 0
    %978 = vmatprep.subr.bf16.mxu0 0
    %979 = vmatpush1.bf16.msra.mxu0 0
    %980 = vmatprep.subr.bf16.mxu0 0
    %981 = vmatpush1.bf16.msra.mxu0 0
    %982 = vmatprep.subr.bf16.mxu0 0
    %983 = vmatpush1.bf16.msra.mxu0 0
    %984 = vmatprep.subr.bf16.mxu0 0
    %985 = vmatpush1.bf16.msra.mxu0 0
    %986 = vmatprep.subr.bf16.mxu0 0
    %987 = vmatpush1.bf16.msra.mxu0 0
    %988 = vmatprep.subr.bf16.mxu0 0
    %989 = vmatpush1.bf16.msra.mxu0 0
    %990 = vmatprep.mubr.bf16.mxu0 0
    %991 = vmatmul.mubr.bf16.gmra.mrb[0].mxu0 %v947
    %v992 = vpop.f32.mrb[0].mxu0
    %v993 = vadd.f32 0.0, %v992
    %v994 = vpop.f32.mrb[0].mxu0
    %v995 = vpop.f32.mrb[0].mxu0
    %v996 = vadd.f32 0.0, %v995
    %v997 = vpop.f32.mrb[0].mxu0
    %998 = vmatprep.mubr.bf16.mxu0 0
    %999 = vmatmul.mubr.bf16.gmra.mrb[0].mxu0 %v950
    %v1000 = vpop.f32.mrb[0].mxu0
    %v1001 = vadd.f32 0.0, %v1000
    %v1002 = vpop.f32.mrb[0].mxu0
    %v1003 = vpop.f32.mrb[0].mxu0
    %v1004 = vadd.f32 0.0, %v1003
    %v1005 = vpop.f32.mrb[0].mxu0
    %1006 = vmatprep.mubr.bf16.mxu0 0
    %1007 = vmatmul.mubr.bf16.gmra.mrb[0].mxu0 %v953
    %v1008 = vpop.f32.mrb[0].mxu0
    %v1009 = vadd.f32 0.0, %v1008
    %v1010 = vpop.f32.mrb[0].mxu0
    %v1011 = vpop.f32.mrb[0].mxu0
    %v1012 = vadd.f32 0.0, %v1011
    %v1013 = vpop.f32.mrb[0].mxu0
    %1014 = vmatprep.mubr.bf16.mxu0 0
    %1015 = vmatmul.mubr.bf16.gmra.mrb[0].mxu0 %v956
    %v1016 = vpop.f32.mrb[0].mxu0
    %v1017 = vadd.f32 0.0, %v1016
    %v1018 = vpop.f32.mrb[0].mxu0
    %v1019 = vpop.f32.mrb[0].mxu0
    %v1020 = vadd.f32 0.0, %v1019
    %v1021 = vpop.f32.mrb[0].mxu0
    %1022 = vdwg.mxu0
    %v1023 = vld [vmem:[%s15] sm:$0xf]
    %v1024 = vld [vmem:[%s15 + $0x4] sm:$0xf]
    %v1025 = vld [vmem:[%s15 + $0x8] sm:$0xf]
    %v1026 = vld [vmem:[%s15 + $0xc] sm:$0xf]
    %v1027 = vld [vmem:[%s15 + $0x10] sm:$0xf]
    %v1028 = vld [vmem:[%s15 + $0x14] sm:$0xf]
    %v1029 = vld [vmem:[%s15 + $0x18] sm:$0xf]
    %v1030 = vld [vmem:[%s15 + $0x1c] sm:$0xf]
    %v1031 = vpack.c.bf16 %v996, %v993
    %v1032 = vpack.c.bf16 %v1004, %v1001
    %v1033 = vpack.c.bf16 %v1012, %v1009
    %v1034 = vpack.c.bf16 %v1020, %v1017
    %v1043 = vunpack.c.l.b16 %v1023
    %v1044 = vunpack.c.l.b16 %v1024
    %v1045 = vunpack.c.l.b16 %v1025
    %v1046 = vunpack.c.l.b16 %v1026
    %v1047 = vunpack.c.l.b16 %v1027
    %v1048 = vunpack.c.l.b16 %v1028
    %v1049 = vunpack.c.l.b16 %v1029
    %v1050 = vunpack.c.l.b16 %v1030
    %v1051 = vpack.c.b16 %v1044, %v1043
    %v1052 = vpack.c.b16 %v1046, %v1045
    %v1053 = vpack.c.b16 %v1048, %v1047
    %v1054 = vpack.c.b16 %v1050, %v1049
    %v1056 = vsel %vm853, %v1051, 0
    %v1059 = vsel %vm853, %v1052, 0
    %v1062 = vsel %vm853, %v1053, 0
    %v1065 = vsel %vm853, %v1054, 0
    %1067 = vmatprep.subr.bf16.mxu0 0
    %1068 = vmatpush1.bf16.msra.mxu0 %v1031
    %1069 = vmatprep.subr.bf16.mxu0 0
    %1070 = vmatpush1.bf16.msra.mxu0 %v1032
    %1071 = vmatprep.subr.bf16.mxu0 0
    %1072 = vmatpush1.bf16.msra.mxu0 %v1033
    %1073 = vmatprep.subr.bf16.mxu0 0
    %1074 = vmatpush1.bf16.msra.mxu0 %v1034
    %1075 = vmatprep.subr.bf16.mxu0 0
    %1076 = vmatpush1.bf16.msra.mxu0 0
    %1077 = vmatprep.subr.bf16.mxu0 0
    %1078 = vmatpush1.bf16.msra.mxu0 0
    %1079 = vmatprep.subr.bf16.mxu0 0
    %1080 = vmatpush1.bf16.msra.mxu0 0
    %1081 = vmatprep.subr.bf16.mxu0 0
    %1082 = vmatpush1.bf16.msra.mxu0 0
    %1083 = vmatprep.subr.bf16.mxu0 0
    %1084 = vmatpush1.bf16.msra.mxu0 0
    %1085 = vmatprep.subr.bf16.mxu0 0
    %1086 = vmatpush1.bf16.msra.mxu0 0
    %1087 = vmatprep.subr.bf16.mxu0 0
    %1088 = vmatpush1.bf16.msra.mxu0 0
    %1089 = vmatprep.subr.bf16.mxu0 0
    %1090 = vmatpush1.bf16.msra.mxu0 0
    %1091 = vmatprep.subr.bf16.mxu0 0
    %1092 = vmatpush1.bf16.msra.mxu0 0
    %1093 = vmatprep.subr.bf16.mxu0 0
    %1094 = vmatpush1.bf16.msra.mxu0 0
    %1095 = vmatprep.subr.bf16.mxu0 0
    %1096 = vmatpush1.bf16.msra.mxu0 0
    %1097 = vmatprep.subr.bf16.mxu0 0
    %1098 = vmatpush1.bf16.msra.mxu0 0
    %1099 = vmatprep.mubr.bf16.mxu0 0
    %1100 = vmatmul.mubr.bf16.gmra.mrb[0].mxu0 %v1056
    %v1101 = vpop.f32.mrb[0].mxu0
    %v1102 = vadd.f32 0.0, %v1101
    %v1103 = vpop.f32.mrb[0].mxu0
    %v1104 = vpop.f32.mrb[0].mxu0
    %v1105 = vadd.f32 0.0, %v1104
    %v1106 = vpop.f32.mrb[0].mxu0
    %1107 = vmatprep.mubr.bf16.mxu0 0
    %1108 = vmatmul.mubr.bf16.gmra.mrb[0].mxu0 %v1059
    %v1109 = vpop.f32.mrb[0].mxu0
    %v1110 = vadd.f32 0.0, %v1109
    %v1111 = vpop.f32.mrb[0].mxu0
    %v1112 = vpop.f32.mrb[0].mxu0
    %v1113 = vadd.f32 0.0, %v1112
    %v1114 = vpop.f32.mrb[0].mxu0
    %1115 = vmatprep.mubr.bf16.mxu0 0
    %1116 = vmatmul.mubr.bf16.gmra.mrb[0].mxu0 %v1062
    %v1117 = vpop.f32.mrb[0].mxu0
    %v1118 = vadd.f32 0.0, %v1117
    %v1119 = vpop.f32.mrb[0].mxu0
    %v1120 = vpop.f32.mrb[0].mxu0
    %v1121 = vadd.f32 0.0, %v1120
    %v1122 = vpop.f32.mrb[0].mxu0
    %1123 = vmatprep.mubr.bf16.mxu0 0
    %1124 = vmatmul.mubr.bf16.gmra.mrb[0].mxu0 %v1065
    %v1125 = vpop.f32.mrb[0].mxu0
    %v1126 = vadd.f32 0.0, %v1125
    %v1127 = vpop.f32.mrb[0].mxu0
    %v1128 = vpop.f32.mrb[0].mxu0
    %v1129 = vadd.f32 0.0, %v1128
    %v1130 = vpop.f32.mrb[0].mxu0
    %1131 = vdwg.mxu0
    %v1132 = vld [vmem:[%s3] sm:$0xf]
    %v1133 = vld [vmem:[%s3 + $0x4] sm:$0xf]
    %v1134 = vld [vmem:[%s3 + $0x8] sm:$0xf]
    %v1135 = vld [vmem:[%s3 + $0xc] sm:$0xf]
    %v1136 = vpack.c.bf16 %v1105, %v1102
    %v1137 = vpack.c.bf16 %v1113, %v1110
    %v1139 = vsel %vm739, %v1137, 0
    %vm1141 = vcmask 1043456
    %v1143 = vsel %vm1141, %v1133, 0
    %1145 = vmatprep.subr.bf16.mxu0 0
    %1146 = vmatpush1.bf16.msra.mxu0 %v1143
    %1147 = vmatprep.subr.bf16.mxu0 0
    %1148 = vmatpush1.bf16.msra.mxu0 0
    %1149 = vmatprep.subr.bf16.mxu0 0
    %1150 = vmatpush1.bf16.msra.mxu0 0
    %1151 = vmatprep.subr.bf16.mxu0 0
    %1152 = vmatpush1.bf16.msra.mxu0 0
    %1153 = vmatprep.subr.bf16.mxu0 0
    %1154 = vmatpush1.bf16.msra.mxu0 0
    %1155 = vmatprep.subr.bf16.mxu0 0
    %1156 = vmatpush1.bf16.msra.mxu0 0
    %1157 = vmatprep.subr.bf16.mxu0 0
    %1158 = vmatpush1.bf16.msra.mxu0 0
    %1159 = vmatprep.subr.bf16.mxu0 0
    %1160 = vmatpush1.bf16.msra.mxu0 0
    %1161 = vmatprep.subr.bf16.mxu0 0
    %1162 = vmatpush1.bf16.msra.mxu0 0
    %1163 = vmatprep.subr.bf16.mxu0 0
    %1164 = vmatpush1.bf16.msra.mxu0 0
    %1165 = vmatprep.subr.bf16.mxu0 0
    %1166 = vmatpush1.bf16.msra.mxu0 0
    %1167 = vmatprep.subr.bf16.mxu0 0
    %1168 = vmatpush1.bf16.msra.mxu0 0
    %1169 = vmatprep.subr.bf16.mxu0 0
    %1170 = vmatpush1.bf16.msra.mxu0 0
    %1171 = vmatprep.subr.bf16.mxu0 0
    %1172 = vmatpush1.bf16.msra.mxu0 0
    %1173 = vmatprep.subr.bf16.mxu0 0
    %1174 = vmatpush1.bf16.msra.mxu0 0
    %1175 = vmatprep.subr.bf16.mxu0 0
    %1176 = vmatpush1.bf16.msra.mxu0 0
    %1177 = vmatprep.mubr.bf16.mxu0 0
    %1178 = vmatmul.mubr.bf16.gmra.mrb[0].mxu0 %v1139
    %v1179 = vpop.f32.mrb[0].mxu0
    %v1180 = vadd.f32 0.0, %v1179
    %v1181 = vpop.f32.mrb[0].mxu0
    %v1182 = vpop.f32.mrb[0].mxu0
    %v1183 = vadd.f32 0.0, %v1182
    %v1184 = vpop.f32.mrb[0].mxu0
    %1185 = vdwg.mxu0
    %v1187 = vsel %vm739, %v1136, 0
    %v1190 = vsel %vm1141, %v1132, 0
    %1192 = vmatprep.subr.bf16.mxu0 0
    %1193 = vmatpush1.bf16.msra.mxu0 %v1190
    %1194 = vmatprep.subr.bf16.mxu0 0
    %1195 = vmatpush1.bf16.msra.mxu0 0
    %1196 = vmatprep.subr.bf16.mxu0 0
    %1197 = vmatpush1.bf16.msra.mxu0 0
    %1198 = vmatprep.subr.bf16.mxu0 0
    %1199 = vmatpush1.bf16.msra.mxu0 0
    %1200 = vmatprep.subr.bf16.mxu0 0
    %1201 = vmatpush1.bf16.msra.mxu0 0
    %1202 = vmatprep.subr.bf16.mxu0 0
    %1203 = vmatpush1.bf16.msra.mxu0 0
    %1204 = vmatprep.subr.bf16.mxu0 0
    %1205 = vmatpush1.bf16.msra.mxu0 0
    %1206 = vmatprep.subr.bf16.mxu0 0
    %1207 = vmatpush1.bf16.msra.mxu0 0
    %1208 = vmatprep.subr.bf16.mxu0 0
    %1209 = vmatpush1.bf16.msra.mxu0 0
    %1210 = vmatprep.subr.bf16.mxu0 0
    %1211 = vmatpush1.bf16.msra.mxu0 0
    %1212 = vmatprep.subr.bf16.mxu0 0
    %1213 = vmatpush1.bf16.msra.mxu0 0
    %1214 = vmatprep.subr.bf16.mxu0 0
    %1215 = vmatpush1.bf16.msra.mxu0 0
    %1216 = vmatprep.subr.bf16.mxu0 0
    %1217 = vmatpush1.bf16.msra.mxu0 0
    %1218 = vmatprep.subr.bf16.mxu0 0
    %1219 = vmatpush1.bf16.msra.mxu0 0
    %1220 = vmatprep.subr.bf16.mxu0 0
    %1221 = vmatpush1.bf16.msra.mxu0 0
    %1222 = vmatprep.subr.bf16.mxu0 0
    %1223 = vmatpush1.bf16.msra.mxu0 0
    %1224 = vmatprep.mubr.bf16.mxu0 0
    %1225 = vmatmul.mubr.bf16.gmra.mrb[0].mxu0 %v1187
    %v1226 = vpop.f32.mrb[0].mxu0
    %v1227 = vadd.f32 %v1180, %v1226
    %v1228 = vpop.f32.mrb[0].mxu0
    %v1229 = vpop.f32.mrb[0].mxu0
    %v1230 = vadd.f32 %v1183, %v1229
    %v1231 = vpop.f32.mrb[0].mxu0
    %1232 = vdwg.mxu0
    %v1233 = vpack.c.bf16 %v1121, %v1118
    %v1235 = vsel %vm739, %v1233, 0
    %v1238 = vsel %vm1141, %v1134, 0
    %1240 = vmatprep.subr.bf16.mxu0 0
    %1241 = vmatpush1.bf16.msra.mxu0 %v1238
    %1242 = vmatprep.subr.bf16.mxu0 0
    %1243 = vmatpush1.bf16.msra.mxu0 0
    %1244 = vmatprep.subr.bf16.mxu0 0
    %1245 = vmatpush1.bf16.msra.mxu0 0
    %1246 = vmatprep.subr.bf16.mxu0 0
    %1247 = vmatpush1.bf16.msra.mxu0 0
    %1248 = vmatprep.subr.bf16.mxu0 0
    %1249 = vmatpush1.bf16.msra.mxu0 0
    %1250 = vmatprep.subr.bf16.mxu0 0
    %1251 = vmatpush1.bf16.msra.mxu0 0
    %1252 = vmatprep.subr.bf16.mxu0 0
    %1253 = vmatpush1.bf16.msra.mxu0 0
    %1254 = vmatprep.subr.bf16.mxu0 0
    %1255 = vmatpush1.bf16.msra.mxu0 0
    %1256 = vmatprep.subr.bf16.mxu0 0
    %1257 = vmatpush1.bf16.msra.mxu0 0
    %1258 = vmatprep.subr.bf16.mxu0 0
    %1259 = vmatpush1.bf16.msra.mxu0 0
    %1260 = vmatprep.subr.bf16.mxu0 0
    %1261 = vmatpush1.bf16.msra.mxu0 0
    %1262 = vmatprep.subr.bf16.mxu0 0
    %1263 = vmatpush1.bf16.msra.mxu0 0
    %1264 = vmatprep.subr.bf16.mxu0 0
    %1265 = vmatpush1.bf16.msra.mxu0 0
    %1266 = vmatprep.subr.bf16.mxu0 0
    %1267 = vmatpush1.bf16.msra.mxu0 0
    %1268 = vmatprep.subr.bf16.mxu0 0
    %1269 = vmatpush1.bf16.msra.mxu0 0
    %1270 = vmatprep.subr.bf16.mxu0 0
    %1271 = vmatpush1.bf16.msra.mxu0 0
    %1272 = vmatprep.mubr.bf16.mxu0 0
    %1273 = vmatmul.mubr.bf16.gmra.mrb[0].mxu0 %v1235
    %v1274 = vpop.f32.mrb[0].mxu0
    %v1275 = vadd.f32 0.0, %v1274
    %v1276 = vpop.f32.mrb[0].mxu0
    %v1277 = vpop.f32.mrb[0].mxu0
    %v1278 = vadd.f32 0.0, %v1277
    %v1279 = vpop.f32.mrb[0].mxu0
    %1280 = vdwg.mxu0
    %v1281 = vadd.f32 %v1227, %v1275
    %v1282 = vadd.f32 %v1230, %v1278
    %v1283 = vpack.c.bf16 %v1129, %v1126
    %v1285 = vsel %vm739, %v1283, 0
    %v1288 = vsel %vm1141, %v1135, 0
    %1290 = vmatprep.subr.bf16.mxu0 0
    %1291 = vmatpush1.bf16.msra.mxu0 %v1288
    %1292 = vmatprep.subr.bf16.mxu0 0
    %1293 = vmatpush1.bf16.msra.mxu0 0
    %1294 = vmatprep.subr.bf16.mxu0 0
    %1295 = vmatpush1.bf16.msra.mxu0 0
    %1296 = vmatprep.subr.bf16.mxu0 0
    %1297 = vmatpush1.bf16.msra.mxu0 0
    %1298 = vmatprep.subr.bf16.mxu0 0
    %1299 = vmatpush1.bf16.msra.mxu0 0
    %1300 = vmatprep.subr.bf16.mxu0 0
    %1301 = vmatpush1.bf16.msra.mxu0 0
    %1302 = vmatprep.subr.bf16.mxu0 0
    %1303 = vmatpush1.bf16.msra.mxu0 0
    %1304 = vmatprep.subr.bf16.mxu0 0
    %1305 = vmatpush1.bf16.msra.mxu0 0
    %1306 = vmatprep.subr.bf16.mxu0 0
    %1307 = vmatpush1.bf16.msra.mxu0 0
    %1308 = vmatprep.subr.bf16.mxu0 0
    %1309 = vmatpush1.bf16.msra.mxu0 0
    %1310 = vmatprep.subr.bf16.mxu0 0
    %1311 = vmatpush1.bf16.msra.mxu0 0
    %1312 = vmatprep.subr.bf16.mxu0 0
    %1313 = vmatpush1.bf16.msra.mxu0 0
    %1314 = vmatprep.subr.bf16.mxu0 0
    %1315 = vmatpush1.bf16.msra.mxu0 0
    %1316 = vmatprep.subr.bf16.mxu0 0
    %1317 = vmatpush1.bf16.msra.mxu0 0
    %1318 = vmatprep.subr.bf16.mxu0 0
    %1319 = vmatpush1.bf16.msra.mxu0 0
    %1320 = vmatprep.subr.bf16.mxu0 0
    %1321 = vmatpush1.bf16.msra.mxu0 0
    %1322 = vmatprep.mubr.bf16.mxu0 0
    %1323 = vmatmul.mubr.bf16.gmra.mrb[0].mxu0 %v1285
    %v1324 = vpop.f32.mrb[0].mxu0
    %v1325 = vadd.f32 0.0, %v1324
    %v1326 = vpop.f32.mrb[0].mxu0
    %v1327 = vpop.f32.mrb[0].mxu0
    %v1328 = vadd.f32 0.0, %v1327
    %v1329 = vpop.f32.mrb[0].mxu0
    %1330 = vdwg.mxu0
    %v1331 = vadd.f32 %v1281, %v1325
    %v1332 = vadd.f32 %v1282, %v1328
    %v1333 = vld [vmem:[%s4] sm:$0x1]
    %v1335 = vlaneseq
    %v1336 = vshrl.u32 %v1335, 7
    %v1337 = vsub.s32 0, %v1336
    %v1338 = vrot.slane %v1333, %v1337
    %v1340 = vadd.f32 %v1331, %v1338
    %v1341 = vadd.f32 %v1332, %v1338
    %v1342 = vadd.f32 %v1340, %v131
    %v1343 = vadd.f32 %v1341, %v132
    %v1344 = vsel %vm157, %v1342, 0.0
    %1345 = vadd.xlane.f32.xlu0 %v1344
    %v1346 = vpop.xlane.xlu0 %1345
    %v1347 = vsel %vm157, %v1343, 0.0
    %1348 = vadd.xlane.f32.xlu0 %v1347
    %v1349 = vpop.xlane.xlu0 %1348
    %v1350 = vrcp.pop 32.0
    %v1351 = vmul.f32 %v1346, %v1350
    %v1352 = vmul.f32 %v1349, %v1350
    %v1353 = vsub.f32 %v1342, %v1351
    %v1354 = vsub.f32 %v1343, %v1352
    %v1355 = vmul.f32 %v1353, %v1353
    %v1356 = vmul.f32 %v1354, %v1354
    %v1357 = vsel %vm157, %v1355, 0.0
    %1358 = vadd.xlane.f32.xlu0 %v1357
    %v1359 = vpop.xlane.xlu0 %1358
    %v1360 = vsel %vm157, %v1356, 0.0
    %1361 = vadd.xlane.f32.xlu0 %v1360
    %v1362 = vpop.xlane.xlu0 %1361
    %v1363 = vmul.f32 %v1359, %v1350
    %v1364 = vmul.f32 %v1362, %v1350
    %v1365 = vadd.f32 %v1363, 1e-05
    %v1366 = vadd.f32 %v1364, 1e-05
    %v1367 = vrsqrt.pop %v1365
    %v1368 = vrsqrt.pop %v1366
    %v1369 = vmul.f32 %v1353, %v1367
    %v1370 = vmul.f32 %v1354, %v1368
    %v1371 = vld [vmem:[%s5] sm:$0x1]
    %v1373 = vlaneseq
    %v1374 = vshrl.u32 %v1373, 7
    %v1375 = vsub.s32 0, %v1374
    %v1376 = vrot.slane %v1371, %v1375
    %v1378 = vmul.f32 %v1369, %v1376
    %v1379 = vmul.f32 %v1370, %v1376
    %v1380 = vld [vmem:[#allocation5] sm:$0x1]
    %v1382 = vlaneseq
    %v1383 = vshrl.u32 %v1382, 7
    %v1384 = vsub.s32 0, %v1383
    %v1385 = vrot.slane %v1380, %v1384
    %v1387 = vadd.f32 %v1378, %v1385
    %v1388 = vadd.f32 %v1379, %v1385
    %v1389 = vpack.c.bf16 %v1388, %v1387
    %v1390 = vld [vmem:[%s7] sm:$0xf]
    %v1391 = vld [vmem:[%s7 + $0x4] sm:$0xf]
    %v1392 = vld [vmem:[%s7 + $0x8] sm:$0xf]
    %v1393 = vld [vmem:[%s7 + $0xc] sm:$0xf]
    %v1394 = vld [vmem:[#allocation7] sm:$0x1]
    %v1396 = vlaneseq
    %v1397 = vshrl.u32 %v1396, 7
    %v1398 = vsub.s32 0, %v1397
    %v1399 = vrot.slane %v1394, %v1398
    %v1405 = vunpack.c.l.b16 %v1390
    %v1406 = vunpack.c.l.b16 %v1391
    %v1407 = vunpack.c.l.b16 %v1392
    %v1408 = vunpack.c.l.b16 %v1393
    %v1409 = vpack.c.b16 %v1406, %v1405
    %v1410 = vpack.c.b16 %v1408, %v1407
    %v1414 = vsel %vm157, %v1389, 0
    %1416 = vmatprep.subr.bf16.mxu0 0
    %1417 = vmatpush1.bf16.msra.mxu0 %v1409
    %1418 = vmatprep.subr.bf16.mxu0 0
    %1419 = vmatpush1.bf16.msra.mxu0 %v1410
    %1420 = vmatprep.subr.bf16.mxu0 0
    %1421 = vmatpush1.bf16.msra.mxu0 0
    %1422 = vmatprep.subr.bf16.mxu0 0
    %1423 = vmatpush1.bf16.msra.mxu0 0
    %1424 = vmatprep.subr.bf16.mxu0 0
    %1425 = vmatpush1.bf16.msra.mxu0 0
    %1426 = vmatprep.subr.bf16.mxu0 0
    %1427 = vmatpush1.bf16.msra.mxu0 0
    %1428 = vmatprep.subr.bf16.mxu0 0
    %1429 = vmatpush1.bf16.msra.mxu0 0
    %1430 = vmatprep.subr.bf16.mxu0 0
    %1431 = vmatpush1.bf16.msra.mxu0 0
    %1432 = vmatprep.subr.bf16.mxu0 0
    %1433 = vmatpush1.bf16.msra.mxu0 0
    %1434 = vmatprep.subr.bf16.mxu0 0
    %1435 = vmatpush1.bf16.msra.mxu0 0
    %1436 = vmatprep.subr.bf16.mxu0 0
    %1437 = vmatpush1.bf16.msra.mxu0 0
    %1438 = vmatprep.subr.bf16.mxu0 0
    %1439 = vmatpush1.bf16.msra.mxu0 0
    %1440 = vmatprep.subr.bf16.mxu0 0
    %1441 = vmatpush1.bf16.msra.mxu0 0
    %1442 = vmatprep.subr.bf16.mxu0 0
    %1443 = vmatpush1.bf16.msra.mxu0 0
    %1444 = vmatprep.subr.bf16.mxu0 0
    %1445 = vmatpush1.bf16.msra.mxu0 0
    %1446 = vmatprep.subr.bf16.mxu0 0
    %1447 = vmatpush1.bf16.msra.mxu0 0
    %1448 = vmatprep.mubr.bf16.mxu0 0
    %1449 = vmatmul.mubr.bf16.gmra.mrb[0].mxu0 %v1414
    %v1450 = vpop.f32.mrb[0].mxu0
    %v1451 = vadd.f32 %v1399, %v1450
    %v1452 = vpop.f32.mrb[0].mxu0
    %v1453 = vpop.f32.mrb[0].mxu0
    %v1454 = vadd.f32 %v1399, %v1453
    %v1455 = vpop.f32.mrb[0].mxu0
    %1456 = vdwg.mxu0
    %v1457 = vmax.f32 %v1451, 0.0
    %v1458 = vmax.f32 %v1454, 0.0
    %v1459 = vpack.c.bf16 %v1458, %v1457
    %v1460 = vld [vmem:[%s9] sm:$0xf]
    %v1461 = vld [vmem:[%s9 + $0x4] sm:$0xf]
    %v1462 = vld [vmem:[%s9 + $0x8] sm:$0xf]
    %v1463 = vld [vmem:[%s9 + $0xc] sm:$0xf]
    %v1464 = vld [vmem:[%s9 + $0x10] sm:$0xf]
    %v1465 = vld [vmem:[%s9 + $0x14] sm:$0xf]
    %v1466 = vld [vmem:[%s9 + $0x18] sm:$0xf]
    %v1467 = vld [vmem:[%s9 + $0x1c] sm:$0xf]
    %v1468 = vld [vmem:[#allocation8] sm:$0x1]
    %v1470 = vlaneseq
    %v1471 = vshrl.u32 %v1470, 7
    %v1472 = vsub.s32 0, %v1471
    %v1473 = vrot.slane %v1468, %v1472
    %v1483 = vunpack.c.l.b16 %v1460
    %v1484 = vunpack.c.l.b16 %v1461
    %v1485 = vunpack.c.l.b16 %v1462
    %v1486 = vunpack.c.l.b16 %v1463
    %v1487 = vunpack.c.l.b16 %v1464
    %v1488 = vunpack.c.l.b16 %v1465
    %v1489 = vunpack.c.l.b16 %v1466
    %v1490 = vunpack.c.l.b16 %v1467
    %v1491 = vpack.c.b16 %v1484, %v1483
    %v1492 = vpack.c.b16 %v1486, %v1485
    %v1493 = vpack.c.b16 %v1488, %v1487
    %v1494 = vpack.c.b16 %v1490, %v1489
    %v1500 = vsel %vm853, %v1459, 0
    %1502 = vmatprep.subr.bf16.mxu0 0
    %1503 = vmatpush1.bf16.msra.mxu0 %v1491
    %1504 = vmatprep.subr.bf16.mxu0 0
    %1505 = vmatpush1.bf16.msra.mxu0 %v1492
    %1506 = vmatprep.subr.bf16.mxu0 0
    %1507 = vmatpush1.bf16.msra.mxu0 %v1493
    %1508 = vmatprep.subr.bf16.mxu0 0
    %1509 = vmatpush1.bf16.msra.mxu0 %v1494
    %1510 = vmatprep.subr.bf16.mxu0 0
    %1511 = vmatpush1.bf16.msra.mxu0 0
    %1512 = vmatprep.subr.bf16.mxu0 0
    %1513 = vmatpush1.bf16.msra.mxu0 0
    %1514 = vmatprep.subr.bf16.mxu0 0
    %1515 = vmatpush1.bf16.msra.mxu0 0
    %1516 = vmatprep.subr.bf16.mxu0 0
    %1517 = vmatpush1.bf16.msra.mxu0 0
    %1518 = vmatprep.subr.bf16.mxu0 0
    %1519 = vmatpush1.bf16.msra.mxu0 0
    %1520 = vmatprep.subr.bf16.mxu0 0
    %1521 = vmatpush1.bf16.msra.mxu0 0
    %1522 = vmatprep.subr.bf16.mxu0 0
    %1523 = vmatpush1.bf16.msra.mxu0 0
    %1524 = vmatprep.subr.bf16.mxu0 0
    %1525 = vmatpush1.bf16.msra.mxu0 0
    %1526 = vmatprep.subr.bf16.mxu0 0
    %1527 = vmatpush1.bf16.msra.mxu0 0
    %1528 = vmatprep.subr.bf16.mxu0 0
    %1529 = vmatpush1.bf16.msra.mxu0 0
    %1530 = vmatprep.subr.bf16.mxu0 0
    %1531 = vmatpush1.bf16.msra.mxu0 0
    %1532 = vmatprep.subr.bf16.mxu0 0
    %1533 = vmatpush1.bf16.msra.mxu0 0
    %1534 = vmatprep.mubr.bf16.mxu0 0
    %1535 = vmatmul.mubr.bf16.gmra.mrb[0].mxu0 %v1500
    %v1536 = vpop.f32.mrb[0].mxu0
    %v1537 = vadd.f32 %v1473, %v1536
    %v1538 = vpop.f32.mrb[0].mxu0
    %v1539 = vpop.f32.mrb[0].mxu0
    %v1540 = vadd.f32 %v1473, %v1539
    %v1541 = vpop.f32.mrb[0].mxu0
    %1542 = vdwg.mxu0
    %1543 = vst.msk [vmem:[#allocation13] sm:$0xff] %vm157, %v1537
    %1544 = vst.msk [vmem:[#allocation13 + $0x8] sm:$0xff] %vm157, %v1540
    // Predicated region
    $region90: #{multi_head_transformer.1} parent=1 // pred_check
      _
    $region91: #{multi_head_transformer.1} parent=1 // pred_check_branch
      %1546 = sbr.rel (0) target = $region93
    $region92: #{multi_head_transformer.1} parent=1 // pred_region
      %s1548 = ssub.s32 256, 256
      %1549 = vsyncadd [#allocation4], %s1548
      %s1550 = sshll.u32 [#allocation13], 4
      %s1551 = int_to_ptr.vmem [resolvable:$true] %s1550
      %1556 = dma.vmem_to_hbm [thread:$0]  %s1551, 256, %s16, [#allocation4], 128, 128, 8
    $region93: #{multi_head_transformer.1} parent=1 // pred_fallthru
      _
    // Predicated region
    $region94: #{multi_head_transformer.1} parent=1 // pred_check
      _
    $region95: #{multi_head_transformer.1} parent=1 // pred_check_branch
      %1558 = sbr.rel (0) target = $region97
    $region96: #{multi_head_transformer.1} parent=1 // pred_region
      %1559 = dma.done [#allocation4], 256
    $region97: #{multi_head_transformer.1} parent=1 // pred_fallthru
      _
    %1560 = vsyncpa [#allocation3], 1
    %1561 = vsyncpa [#allocation6], 1
    %1562 = vsyncpa [#allocation9], 1
    %1563 = vsyncpa [#allocation12], 1
    %1564 = vsyncpa [#allocation4], 1

</llo_original>
